<compile_context>
chip_gen: v7x
topology: tpu7x:2x2x1
jax: 0.10.0
libtpu: 0.0.40
codegen_flags: <defaults>
</compile_context>

<pallas_src>
import functools
import math

import jax
import jax.numpy as jnp
from jax.experimental import pallas as pl
from jax.experimental.pallas import tpu as pltpu


def _layer_norm_f32(x, gamma, beta, eps):
    mu = jnp.mean(x, axis=-1, keepdims=True)
    xc = x - mu
    var = jnp.mean(xc * xc, axis=-1, keepdims=True)
    return xc * jax.lax.rsqrt(var + eps) * gamma + beta


def _gelu_exact(x):
    # matches torch.nn.functional.gelu (erf form), kept in f32
    return 0.5 * x * (1.0 + jax.lax.erf(x * (1.0 / math.sqrt(2.0))))


def transformer_layer_kernel(x_q_ref, x_kv_ref,
                             g1_ref, be1_ref,
                             wq_ref, bq_ref, wk_ref, bk_ref, wv_ref, bv_ref,
                             wo_ref, bo_ref,
                             g2_ref, be2_ref, w1_ref, bf1_ref, w2_ref, bf2_ref,
                             o_ref, *, eps, n_heads, ffn_block):
    f32 = jnp.float32
    bf16 = jnp.bfloat16

    x_q = x_q_ref[0].astype(f32)        # (Tq, D)  query tile (also the residual stream)
    x_kv = x_kv_ref[0].astype(f32)      # (S,  D)  full sequence for K/V
    Tq, D = x_q.shape
    hd = D // n_heads
    scale = 1.0 / math.sqrt(hd)

    g1 = g1_ref[0].astype(f32)
    be1 = be1_ref[0].astype(f32)

    # ---------------- attention block (pre-LN) ----------------
    hq = _layer_norm_f32(x_q, g1, be1, eps).astype(bf16)     # (Tq, D)
    hkv = _layer_norm_f32(x_kv, g1, be1, eps).astype(bf16)   # (S, D)

    q = jnp.dot(hq, wq_ref[...], preferred_element_type=f32) + bq_ref[0]
    q = q * scale                       # fold 1/sqrt(hd) into q
    k = jnp.dot(hkv, wk_ref[...], preferred_element_type=f32) + bk_ref[0]
    v = jnp.dot(hkv, wv_ref[...], preferred_element_type=f32) + bv_ref[0]

    # static per-head loop: lane-aligned slices, no 3-D transposes / relayouts
    ctx_parts = []
    for h in range(n_heads):
        lo = h * hd
        qh = q[:, lo:lo + hd].astype(bf16)      # (Tq, hd)
        kh = k[:, lo:lo + hd].astype(bf16)      # (S,  hd)
        vh = v[:, lo:lo + hd].astype(bf16)      # (S,  hd)
        s = jnp.einsum('qd,kd->qk', qh, kh, preferred_element_type=f32)   # (Tq, S)
        s = s - jnp.max(s, axis=-1, keepdims=True)
        p = jnp.exp(s)
        p = p * pl.reciprocal(jnp.sum(p, axis=-1, keepdims=True), approx=True)
        ctx_parts.append(jnp.dot(p.astype(bf16), vh, preferred_element_type=f32))
    ctx = jnp.concatenate(ctx_parts, axis=-1)   # (Tq, D)

    attn_out = jnp.dot(ctx.astype(bf16), wo_ref[...], preferred_element_type=f32) + bo_ref[0]
    x1 = x_q + attn_out                         # residual 1 (f32)

    # ---------------- FFN block (pre-LN), chunked over the ffn dim ----------------
    h2 = _layer_norm_f32(x1, g2_ref[0].astype(f32), be2_ref[0].astype(f32), eps).astype(bf16)
    ffn_dim = w1_ref.shape[1]
    n_chunks = -(-ffn_dim // ffn_block)
    acc = jnp.zeros((Tq, D), f32)
    for c in range(n_chunks):
        c0 = c * ffn_block
        c1 = min(ffn_dim, c0 + ffn_block)
        f = jnp.dot(h2, w1_ref[:, c0:c1], preferred_element_type=f32) + bf1_ref[0, c0:c1]
        f = _gelu_exact(f)
        acc = acc + jnp.dot(f.astype(bf16), w2_ref[c0:c1, :], preferred_element_type=f32)

    o_ref[0, :, :] = (x1 + acc + bf2_ref[0]).astype(o_ref.dtype)


_PARAM_ORDER = ['g1', 'be1', 'wq', 'bq', 'wk', 'bk', 'wv', 'bv',
                'wo', 'bo', 'g2', 'be2', 'w1', 'bf1', 'w2', 'bf2']
_WEIGHT_KEYS = ('wq', 'wk', 'wv', 'wo', 'w1', 'w2')   # stored / passed in bf16


def transformer_layer(x, params, *, n_heads, eps, q_block=None, ffn_block=512):
    B, S, D = x.shape
    ffn_dim = params['w1'].shape[1]
    ffn_block = min(ffn_block, ffn_dim)

    # choose a query-tile size (multiple of 8 on the sublane axis, or the full S)
    if q_block is None:
        q_block = S
        for cand in (256, 128):
            if S % cand == 0:
                q_block = cand
                break
    if S % q_block != 0:
        q_block = S
    n_q = S // q_block

    def const_spec(shape):
        return pl.BlockSpec(shape, lambda b, qi: (0,) * len(shape))

    in_specs = [
        pl.BlockSpec((1, q_block, D), lambda b, qi: (b, qi, 0)),   # query tile of x
        pl.BlockSpec((1, S, D), lambda b, qi: (b, 0, 0)),          # full sequence for K/V
    ]
    in_specs += [const_spec(params[name].shape) for name in _PARAM_ORDER]

    kernel = functools.partial(transformer_layer_kernel, eps=eps, n_heads=n_heads,
                               ffn_block=ffn_block)

    # explicit VMEM budget: params (pipeline double-buffers them) + activation blocks
    # + per-head / per-chunk intermediates, with headroom; clamped to a range that is
    # valid on v5e/v6e (128 MiB physical) and v7x (64 MiB physical).
    param_bytes = sum(int(params[n].size) * jnp.dtype(params[n].dtype).itemsize
                      for n in _PARAM_ORDER)
    act_bytes = ((q_block * D + S * D) * 4 * 2          # x tiles + q/k/v-ish
                 + q_block * S * 4                      # per-head score block
                 + q_block * ffn_block * 4              # FFN chunk
                 + q_block * D * 4 * 3)                 # ctx / residual / acc
    vmem_limit = int(2 * param_bytes + 8 * act_bytes + (8 << 20))
    vmem_limit = max(min(vmem_limit, 64 << 20), 32 << 20)

    return pl.pallas_call(
        kernel,
        out_shape=jax.ShapeDtypeStruct((B, S, D), x.dtype),
        grid=(B, n_q),
        in_specs=in_specs,
        out_specs=pl.BlockSpec((1, q_block, D), lambda b, qi: (b, qi, 0)),
        compiler_params=pltpu.CompilerParams(
            dimension_semantics=("parallel", "parallel"),
            vmem_limit_bytes=vmem_limit),
    )(x, x, *[params[name] for name in _PARAM_ORDER])


# ---------------- pure-JAX reference (f32 math, same weights) ----------------
def reference(x, params, *, n_heads, eps):
    f32 = lambda a: a.astype(jnp.float32)

    def ln(h, g, b):
        mu = jnp.mean(h, axis=-1, keepdims=True)
        var = jnp.mean((h - mu) ** 2, axis=-1, keepdims=True)
        return (h - mu) / jnp.sqrt(var + eps) * g[0] + b[0]

    B, S, D = x.shape
    hd = D // n_heads
    h = ln(x, params['g1'], params['be1'])
    q = h @ f32(params['wq']) + params['bq'][0]
    k = h @ f32(params['wk']) + params['bk'][0]
    v = h @ f32(params['wv']) + params['bv'][0]
    q = q.reshape(B, S, n_heads, hd)
    k = k.reshape(B, S, n_heads, hd)
    v = v.reshape(B, S, n_heads, hd)
    aw = jnp.einsum('bthd,bshd->bhts', q, k) / math.sqrt(hd)
    ap = jax.nn.softmax(aw, axis=-1)
    ctx = jnp.einsum('bhts,bshd->bthd', ap, v).reshape(B, S, D)
    x1 = x + ctx @ f32(params['wo']) + params['bo'][0]
    h2 = ln(x1, params['g2'], params['be2'])
    f = h2 @ f32(params['w1']) + params['bf1'][0]
    f = 0.5 * f * (1.0 + jax.lax.erf(f / math.sqrt(2.0)))
    return x1 + f @ f32(params['w2']) + params['bf2'][0]


def init_params(key, dim, ffn_dim):
    keys = jax.random.split(key, 6)

    def lin(k, fan_in, fan_out):
        bound = 1.0 / math.sqrt(fan_in)
        kw, kb = jax.random.split(k)
        w = jax.random.uniform(kw, (fan_in, fan_out), jnp.float32, -bound, bound)
        b = jax.random.uniform(kb, (1, fan_out), jnp.float32, -bound, bound)
        return w, b

    wq, bq = lin(keys[0], dim, dim)
    wk, bk = lin(keys[1], dim, dim)
    wv, bv = lin(keys[2], dim, dim)
    wo, bo = lin(keys[3], dim, dim)
    w1, bf1 = lin(keys[4], dim, ffn_dim)
    w2, bf2 = lin(keys[5], ffn_dim, dim)
    params = {
        'g1': jnp.ones((1, dim), jnp.float32), 'be1': jnp.zeros((1, dim), jnp.float32),
        'g2': jnp.ones((1, dim), jnp.float32), 'be2': jnp.zeros((1, dim), jnp.float32),
        'wq': wq, 'bq': bq, 'wk': wk, 'bk': bk, 'wv': wv, 'bv': bv,
        'wo': wo, 'bo': bo, 'w1': w1, 'bf1': bf1, 'w2': w2, 'bf2': bf2,
    }
    # keep the matmul weights in bf16 (MXU-native, half the VMEM footprint)
    for name in _WEIGHT_KEYS:
        params[name] = params[name].astype(jnp.bfloat16)
    return params


if __name__ == "__main__":
    B, S, D, FFN, H = 2, 8, 32, 64, 4
    EPS = 1e-5
    key = jax.random.PRNGKey(0)
    kx, kp = jax.random.split(key)
    x = jax.random.normal(kx, (B, S, D), jnp.float32)
    params = init_params(kp, D, FFN)

    out = transformer_layer(x, params, n_heads=H, eps=EPS)
    out = jax.block_until_ready(out)

    ref = reference(x, params, n_heads=H, eps=EPS)
    assert out.shape == (B, S, D)
    # bf16 matmul operands + approximate reciprocal => looser tolerance than pure f32
    assert jnp.allclose(out, ref, atol=5e-2, rtol=5e-2), "mismatch vs reference"
    print("KERNEL_OK")
</pallas_src>

<mosaic_0001>
module attributes {stable_mosaic.version = 11 : i64} {
  func.func @transformer_layer_kernel(%arg0: i32, %arg1: i32, %arg2: memref<1x8x32xf32, #tpu.memory_space<vmem>>, %arg3: memref<1x8x32xf32, #tpu.memory_space<vmem>>, %arg4: memref<1x32xf32, #tpu.memory_space<vmem>>, %arg5: memref<1x32xf32, #tpu.memory_space<vmem>>, %arg6: memref<32x32xbf16, #tpu.memory_space<vmem>>, %arg7: memref<1x32xf32, #tpu.memory_space<vmem>>, %arg8: memref<32x32xbf16, #tpu.memory_space<vmem>>, %arg9: memref<1x32xf32, #tpu.memory_space<vmem>>, %arg10: memref<32x32xbf16, #tpu.memory_space<vmem>>, %arg11: memref<1x32xf32, #tpu.memory_space<vmem>>, %arg12: memref<32x32xbf16, #tpu.memory_space<vmem>>, %arg13: memref<1x32xf32, #tpu.memory_space<vmem>>, %arg14: memref<1x32xf32, #tpu.memory_space<vmem>>, %arg15: memref<1x32xf32, #tpu.memory_space<vmem>>, %arg16: memref<32x64xbf16, #tpu.memory_space<vmem>>, %arg17: memref<1x64xf32, #tpu.memory_space<vmem>>, %arg18: memref<64x32xbf16, #tpu.memory_space<vmem>>, %arg19: memref<1x32xf32, #tpu.memory_space<vmem>>, %arg20: memref<1x8x32xf32, #tpu.memory_space<vmem>>) attributes {dimension_semantics = [#tpu.dimension_semantics<parallel>, #tpu.dimension_semantics<parallel>], iteration_bounds = array<i64: 2, 1>, scalar_prefetch = 0 : i64, scratch_operands = 0 : i64, tpu.core_type = #tpu.core_type<tc>, window_params = [{transform_indices = @transform_0, window_bounds = array<i64: 1, 8, 32>}, {transform_indices = @transform_1, window_bounds = array<i64: 1, 8, 32>}, {pipeline_mode = #tpu.pipeline_mode<synchronous>, transform_indices = @transform_2, window_bounds = array<i64: 1, 32>}, {pipeline_mode = #tpu.pipeline_mode<synchronous>, transform_indices = @transform_3, window_bounds = array<i64: 1, 32>}, {pipeline_mode = #tpu.pipeline_mode<synchronous>, transform_indices = @transform_4, window_bounds = array<i64: 32, 32>}, {pipeline_mode = #tpu.pipeline_mode<synchronous>, transform_indices = @transform_5, window_bounds = array<i64: 1, 32>}, {pipeline_mode = #tpu.pipeline_mode<synchronous>, transform_indices = @transform_6, window_bounds = array<i64: 32, 32>}, {pipeline_mode = #tpu.pipeline_mode<synchronous>, transform_indices = @transform_7, window_bounds = array<i64: 1, 32>}, {pipeline_mode = #tpu.pipeline_mode<synchronous>, transform_indices = @transform_8, window_bounds = array<i64: 32, 32>}, {pipeline_mode = #tpu.pipeline_mode<synchronous>, transform_indices = @transform_9, window_bounds = array<i64: 1, 32>}, {pipeline_mode = #tpu.pipeline_mode<synchronous>, transform_indices = @transform_10, window_bounds = array<i64: 32, 32>}, {pipeline_mode = #tpu.pipeline_mode<synchronous>, transform_indices = @transform_11, window_bounds = array<i64: 1, 32>}, {pipeline_mode = #tpu.pipeline_mode<synchronous>, transform_indices = @transform_12, window_bounds = array<i64: 1, 32>}, {pipeline_mode = #tpu.pipeline_mode<synchronous>, transform_indices = @transform_13, window_bounds = array<i64: 1, 32>}, {pipeline_mode = #tpu.pipeline_mode<synchronous>, transform_indices = @transform_14, window_bounds = array<i64: 32, 64>}, {pipeline_mode = #tpu.pipeline_mode<synchronous>, transform_indices = @transform_15, window_bounds = array<i64: 1, 64>}, {pipeline_mode = #tpu.pipeline_mode<synchronous>, transform_indices = @transform_16, window_bounds = array<i64: 64, 32>}, {pipeline_mode = #tpu.pipeline_mode<synchronous>, transform_indices = @transform_17, window_bounds = array<i64: 1, 32>}, {transform_indices = @transform_18, window_bounds = array<i64: 1, 8, 32>}]} {
    %c0 = arith.constant 0 : index
    %c0_0 = arith.constant 0 : index
    %c0_1 = arith.constant 0 : index
    %0 = vector.load %arg2[%c0, %c0_0, %c0_1] : memref<1x8x32xf32, #tpu.memory_space<vmem>>, vector<1x8x32xf32>
    %1 = vector.shape_cast %0 : vector<1x8x32xf32> to vector<8x32xf32>
    %c0_2 = arith.constant 0 : index
    %c0_3 = arith.constant 0 : index
    %c0_4 = arith.constant 0 : index
    %2 = vector.load %arg3[%c0_2, %c0_3, %c0_4] : memref<1x8x32xf32, #tpu.memory_space<vmem>>, vector<1x8x32xf32>
    %3 = vector.shape_cast %2 : vector<1x8x32xf32> to vector<8x32xf32>
    %c0_5 = arith.constant 0 : index
    %c0_6 = arith.constant 0 : index
    %4 = vector.load %arg4[%c0_5, %c0_6] : memref<1x32xf32, #tpu.memory_space<vmem>>, vector<1x32xf32>
    %5 = vector.shape_cast %4 : vector<1x32xf32> to vector<32xf32>
    %c0_7 = arith.constant 0 : index
    %c0_8 = arith.constant 0 : index
    %6 = vector.load %arg5[%c0_7, %c0_8] : memref<1x32xf32, #tpu.memory_space<vmem>>, vector<1x32xf32>
    %7 = vector.shape_cast %6 : vector<1x32xf32> to vector<32xf32>
    %cst = arith.constant dense<0.000000e+00> : vector<8xf32>
    %8 = vector.multi_reduction <add>, %1, %cst [1] : vector<8x32xf32> to vector<8xf32>
    %9 = vector.shape_cast %8 : vector<8xf32> to vector<8x1xf32>
    %cst_9 = arith.constant 3.200000e+01 : f32
    %10 = vector.broadcast %cst_9 : f32 to vector<8x1xf32>
    %11 = arith.divf %9, %10 : vector<8x1xf32>
    %12 = vector.broadcast %11 : vector<8x1xf32> to vector<8x32xf32>
    %13 = arith.subf %1, %12 : vector<8x32xf32>
    %14 = arith.mulf %13, %13 : vector<8x32xf32>
    %cst_10 = arith.constant dense<0.000000e+00> : vector<8xf32>
    %15 = vector.multi_reduction <add>, %14, %cst_10 [1] : vector<8x32xf32> to vector<8xf32>
    %16 = vector.shape_cast %15 : vector<8xf32> to vector<8x1xf32>
    %cst_11 = arith.constant 3.200000e+01 : f32
    %17 = vector.broadcast %cst_11 : f32 to vector<8x1xf32>
    %18 = arith.divf %16, %17 : vector<8x1xf32>
    %cst_12 = arith.constant 9.99999974E-6 : f32
    %19 = vector.broadcast %cst_12 : f32 to vector<8x1xf32>
    %20 = arith.addf %18, %19 : vector<8x1xf32>
    %21 = math.rsqrt %20 : vector<8x1xf32>
    %22 = vector.broadcast %21 : vector<8x1xf32> to vector<8x32xf32>
    %23 = arith.mulf %13, %22 : vector<8x32xf32>
    %24 = vector.shape_cast %5 : vector<32xf32> to vector<1x32xf32>
    %25 = vector.broadcast %24 : vector<1x32xf32> to vector<8x32xf32>
    %26 = arith.mulf %23, %25 : vector<8x32xf32>
    %27 = vector.shape_cast %7 : vector<32xf32> to vector<1x32xf32>
    %28 = vector.broadcast %27 : vector<1x32xf32> to vector<8x32xf32>
    %29 = arith.addf %26, %28 : vector<8x32xf32>
    %30 = arith.truncf %29 : vector<8x32xf32> to vector<8x32xbf16>
    %cst_13 = arith.constant dense<0.000000e+00> : vector<8xf32>
    %31 = vector.multi_reduction <add>, %3, %cst_13 [1] : vector<8x32xf32> to vector<8xf32>
    %32 = vector.shape_cast %31 : vector<8xf32> to vector<8x1xf32>
    %cst_14 = arith.constant 3.200000e+01 : f32
    %33 = vector.broadcast %cst_14 : f32 to vector<8x1xf32>
    %34 = arith.divf %32, %33 : vector<8x1xf32>
    %35 = vector.broadcast %34 : vector<8x1xf32> to vector<8x32xf32>
    %36 = arith.subf %3, %35 : vector<8x32xf32>
    %37 = arith.mulf %36, %36 : vector<8x32xf32>
    %cst_15 = arith.constant dense<0.000000e+00> : vector<8xf32>
    %38 = vector.multi_reduction <add>, %37, %cst_15 [1] : vector<8x32xf32> to vector<8xf32>
    %39 = vector.shape_cast %38 : vector<8xf32> to vector<8x1xf32>
    %cst_16 = arith.constant 3.200000e+01 : f32
    %40 = vector.broadcast %cst_16 : f32 to vector<8x1xf32>
    %41 = arith.divf %39, %40 : vector<8x1xf32>
    %cst_17 = arith.constant 9.99999974E-6 : f32
    %42 = vector.broadcast %cst_17 : f32 to vector<8x1xf32>
    %43 = arith.addf %41, %42 : vector<8x1xf32>
    %44 = math.rsqrt %43 : vector<8x1xf32>
    %45 = vector.broadcast %44 : vector<8x1xf32> to vector<8x32xf32>
    %46 = arith.mulf %36, %45 : vector<8x32xf32>
    %47 = vector.shape_cast %5 : vector<32xf32> to vector<1x32xf32>
    %48 = vector.broadcast %47 : vector<1x32xf32> to vector<8x32xf32>
    %49 = arith.mulf %46, %48 : vector<8x32xf32>
    %50 = vector.shape_cast %7 : vector<32xf32> to vector<1x32xf32>
    %51 = vector.broadcast %50 : vector<1x32xf32> to vector<8x32xf32>
    %52 = arith.addf %49, %51 : vector<8x32xf32>
    %53 = arith.truncf %52 : vector<8x32xf32> to vector<8x32xbf16>
    %c0_18 = arith.constant 0 : index
    %c0_19 = arith.constant 0 : index
    %54 = vector.load %arg6[%c0_18, %c0_19] : memref<32x32xbf16, #tpu.memory_space<vmem>>, vector<32x32xbf16>
    %cst_20 = arith.constant dense<0.000000e+00> : vector<8x32xf32>
    %55 = tpu.matmul %30, %54, %cst_20 {dimension_numbers = #tpu.dot_dimension_numbers<[1], [0], [0], [1], [0, 0, 1, 1], [], []>} : vector<8x32xbf16>, vector<32x32xbf16>, vector<8x32xf32> -> vector<8x32xf32>
    %c0_21 = arith.constant 0 : index
    %c0_22 = arith.constant 0 : index
    %56 = vector.load %arg7[%c0_21, %c0_22] : memref<1x32xf32, #tpu.memory_space<vmem>>, vector<1x32xf32>
    %57 = vector.shape_cast %56 : vector<1x32xf32> to vector<32xf32>
    %58 = vector.shape_cast %57 : vector<32xf32> to vector<1x32xf32>
    %59 = vector.broadcast %58 : vector<1x32xf32> to vector<8x32xf32>
    %60 = arith.addf %55, %59 : vector<8x32xf32>
    %cst_23 = arith.constant 0.353553385 : f32
    %61 = vector.broadcast %cst_23 : f32 to vector<8x32xf32>
    %62 = arith.mulf %60, %61 : vector<8x32xf32>
    %c0_24 = arith.constant 0 : index
    %c0_25 = arith.constant 0 : index
    %63 = vector.load %arg8[%c0_24, %c0_25] : memref<32x32xbf16, #tpu.memory_space<vmem>>, vector<32x32xbf16>
    %cst_26 = arith.constant dense<0.000000e+00> : vector<8x32xf32>
    %64 = tpu.matmul %53, %63, %cst_26 {dimension_numbers = #tpu.dot_dimension_numbers<[1], [0], [0], [1], [0, 0, 1, 1], [], []>} : vector<8x32xbf16>, vector<32x32xbf16>, vector<8x32xf32> -> vector<8x32xf32>
    %c0_27 = arith.constant 0 : index
    %c0_28 = arith.constant 0 : index
    %65 = vector.load %arg9[%c0_27, %c0_28] : memref<1x32xf32, #tpu.memory_space<vmem>>, vector<1x32xf32>
    %66 = vector.shape_cast %65 : vector<1x32xf32> to vector<32xf32>
    %67 = vector.shape_cast %66 : vector<32xf32> to vector<1x32xf32>
    %68 = vector.broadcast %67 : vector<1x32xf32> to vector<8x32xf32>
    %69 = arith.addf %64, %68 : vector<8x32xf32>
    %c0_29 = arith.constant 0 : index
    %c0_30 = arith.constant 0 : index
    %70 = vector.load %arg10[%c0_29, %c0_30] : memref<32x32xbf16, #tpu.memory_space<vmem>>, vector<32x32xbf16>
    %cst_31 = arith.constant dense<0.000000e+00> : vector<8x32xf32>
    %71 = tpu.matmul %53, %70, %cst_31 {dimension_numbers = #tpu.dot_dimension_numbers<[1], [0], [0], [1], [0, 0, 1, 1], [], []>} : vector<8x32xbf16>, vector<32x32xbf16>, vector<8x32xf32> -> vector<8x32xf32>
    %c0_32 = arith.constant 0 : index
    %c0_33 = arith.constant 0 : index
    %72 = vector.load %arg11[%c0_32, %c0_33] : memref<1x32xf32, #tpu.memory_space<vmem>>, vector<1x32xf32>
    %73 = vector.shape_cast %72 : vector<1x32xf32> to vector<32xf32>
    %74 = vector.shape_cast %73 : vector<32xf32> to vector<1x32xf32>
    %75 = vector.broadcast %74 : vector<1x32xf32> to vector<8x32xf32>
    %76 = arith.addf %71, %75 : vector<8x32xf32>
    %77 = vector.extract_strided_slice %62 {offsets = [0, 0], sizes = [8, 8], strides = [1, 1]} : vector<8x32xf32> to vector<8x8xf32>
    %78 = arith.truncf %77 : vector<8x8xf32> to vector<8x8xbf16>
    %79 = vector.extract_strided_slice %69 {offsets = [0, 0], sizes = [8, 8], strides = [1, 1]} : vector<8x32xf32> to vector<8x8xf32>
    %80 = arith.truncf %79 : vector<8x8xf32> to vector<8x8xbf16>
    %81 = vector.extract_strided_slice %76 {offsets = [0, 0], sizes = [8, 8], strides = [1, 1]} : vector<8x32xf32> to vector<8x8xf32>
    %82 = arith.truncf %81 : vector<8x8xf32> to vector<8x8xbf16>
    "tpu.trace_start"() <{level = 10 : i32, message = "qd,kd->qk"}> : () -> ()
    %cst_34 = arith.constant dense<0.000000e+00> : vector<8x8xf32>
    %83 = tpu.matmul %78, %80, %cst_34 {dimension_numbers = #tpu.dot_dimension_numbers<[1], [1], [0], [0], [0, 0, 1, 0], [], []>} : vector<8x8xbf16>, vector<8x8xbf16>, vector<8x8xf32> -> vector<8x8xf32>
    "tpu.trace_stop"() : () -> ()
    %cst_35 = arith.constant dense<0xFF800000> : vector<8xf32>
    %84 = vector.multi_reduction <maximumf>, %83, %cst_35 [1] : vector<8x8xf32> to vector<8xf32>
    %85 = vector.shape_cast %84 : vector<8xf32> to vector<8x1xf32>
    %86 = vector.broadcast %85 : vector<8x1xf32> to vector<8x8xf32>
    %87 = arith.subf %83, %86 : vector<8x8xf32>
    %88 = math.exp %87 : vector<8x8xf32>
    %cst_36 = arith.constant dense<0.000000e+00> : vector<8xf32>
    %89 = vector.multi_reduction <add>, %88, %cst_36 [1] : vector<8x8xf32> to vector<8xf32>
    %90 = vector.shape_cast %89 : vector<8xf32> to vector<8x1xf32>
    %91 = tpu.reciprocal %90 {approx = true} : vector<8x1xf32> -> vector<8x1xf32>
    %92 = vector.broadcast %91 : vector<8x1xf32> to vector<8x8xf32>
    %93 = arith.mulf %88, %92 : vector<8x8xf32>
    %94 = arith.truncf %93 : vector<8x8xf32> to vector<8x8xbf16>
    %cst_37 = arith.constant dense<0.000000e+00> : vector<8x8xf32>
    %95 = tpu.matmul %94, %82, %cst_37 {dimension_numbers = #tpu.dot_dimension_numbers<[1], [0], [0], [1], [0, 0, 1, 1], [], []>} : vector<8x8xbf16>, vector<8x8xbf16>, vector<8x8xf32> -> vector<8x8xf32>
    %96 = vector.extract_strided_slice %62 {offsets = [0, 8], sizes = [8, 8], strides = [1, 1]} : vector<8x32xf32> to vector<8x8xf32>
    %97 = arith.truncf %96 : vector<8x8xf32> to vector<8x8xbf16>
    %98 = vector.extract_strided_slice %69 {offsets = [0, 8], sizes = [8, 8], strides = [1, 1]} : vector<8x32xf32> to vector<8x8xf32>
    %99 = arith.truncf %98 : vector<8x8xf32> to vector<8x8xbf16>
    %100 = vector.extract_strided_slice %76 {offsets = [0, 8], sizes = [8, 8], strides = [1, 1]} : vector<8x32xf32> to vector<8x8xf32>
    %101 = arith.truncf %100 : vector<8x8xf32> to vector<8x8xbf16>
    "tpu.trace_start"() <{level = 10 : i32, message = "qd,kd->qk"}> : () -> ()
    %cst_38 = arith.constant dense<0.000000e+00> : vector<8x8xf32>
    %102 = tpu.matmul %97, %99, %cst_38 {dimension_numbers = #tpu.dot_dimension_numbers<[1], [1], [0], [0], [0, 0, 1, 0], [], []>} : vector<8x8xbf16>, vector<8x8xbf16>, vector<8x8xf32> -> vector<8x8xf32>
    "tpu.trace_stop"() : () -> ()
    %cst_39 = arith.constant dense<0xFF800000> : vector<8xf32>
    %103 = vector.multi_reduction <maximumf>, %102, %cst_39 [1] : vector<8x8xf32> to vector<8xf32>
    %104 = vector.shape_cast %103 : vector<8xf32> to vector<8x1xf32>
    %105 = vector.broadcast %104 : vector<8x1xf32> to vector<8x8xf32>
    %106 = arith.subf %102, %105 : vector<8x8xf32>
    %107 = math.exp %106 : vector<8x8xf32>
    %cst_40 = arith.constant dense<0.000000e+00> : vector<8xf32>
    %108 = vector.multi_reduction <add>, %107, %cst_40 [1] : vector<8x8xf32> to vector<8xf32>
    %109 = vector.shape_cast %108 : vector<8xf32> to vector<8x1xf32>
    %110 = tpu.reciprocal %109 {approx = true} : vector<8x1xf32> -> vector<8x1xf32>
    %111 = vector.broadcast %110 : vector<8x1xf32> to vector<8x8xf32>
    %112 = arith.mulf %107, %111 : vector<8x8xf32>
    %113 = arith.truncf %112 : vector<8x8xf32> to vector<8x8xbf16>
    %cst_41 = arith.constant dense<0.000000e+00> : vector<8x8xf32>
    %114 = tpu.matmul %113, %101, %cst_41 {dimension_numbers = #tpu.dot_dimension_numbers<[1], [0], [0], [1], [0, 0, 1, 1], [], []>} : vector<8x8xbf16>, vector<8x8xbf16>, vector<8x8xf32> -> vector<8x8xf32>
    %115 = vector.extract_strided_slice %62 {offsets = [0, 16], sizes = [8, 8], strides = [1, 1]} : vector<8x32xf32> to vector<8x8xf32>
    %116 = arith.truncf %115 : vector<8x8xf32> to vector<8x8xbf16>
    %117 = vector.extract_strided_slice %69 {offsets = [0, 16], sizes = [8, 8], strides = [1, 1]} : vector<8x32xf32> to vector<8x8xf32>
    %118 = arith.truncf %117 : vector<8x8xf32> to vector<8x8xbf16>
    %119 = vector.extract_strided_slice %76 {offsets = [0, 16], sizes = [8, 8], strides = [1, 1]} : vector<8x32xf32> to vector<8x8xf32>
    %120 = arith.truncf %119 : vector<8x8xf32> to vector<8x8xbf16>
    "tpu.trace_start"() <{level = 10 : i32, message = "qd,kd->qk"}> : () -> ()
    %cst_42 = arith.constant dense<0.000000e+00> : vector<8x8xf32>
    %121 = tpu.matmul %116, %118, %cst_42 {dimension_numbers = #tpu.dot_dimension_numbers<[1], [1], [0], [0], [0, 0, 1, 0], [], []>} : vector<8x8xbf16>, vector<8x8xbf16>, vector<8x8xf32> -> vector<8x8xf32>
    "tpu.trace_stop"() : () -> ()
    %cst_43 = arith.constant dense<0xFF800000> : vector<8xf32>
    %122 = vector.multi_reduction <maximumf>, %121, %cst_43 [1] : vector<8x8xf32> to vector<8xf32>
    %123 = vector.shape_cast %122 : vector<8xf32> to vector<8x1xf32>
    %124 = vector.broadcast %123 : vector<8x1xf32> to vector<8x8xf32>
    %125 = arith.subf %121, %124 : vector<8x8xf32>
    %126 = math.exp %125 : vector<8x8xf32>
    %cst_44 = arith.constant dense<0.000000e+00> : vector<8xf32>
    %127 = vector.multi_reduction <add>, %126, %cst_44 [1] : vector<8x8xf32> to vector<8xf32>
    %128 = vector.shape_cast %127 : vector<8xf32> to vector<8x1xf32>
    %129 = tpu.reciprocal %128 {approx = true} : vector<8x1xf32> -> vector<8x1xf32>
    %130 = vector.broadcast %129 : vector<8x1xf32> to vector<8x8xf32>
    %131 = arith.mulf %126, %130 : vector<8x8xf32>
    %132 = arith.truncf %131 : vector<8x8xf32> to vector<8x8xbf16>
    %cst_45 = arith.constant dense<0.000000e+00> : vector<8x8xf32>
    %133 = tpu.matmul %132, %120, %cst_45 {dimension_numbers = #tpu.dot_dimension_numbers<[1], [0], [0], [1], [0, 0, 1, 1], [], []>} : vector<8x8xbf16>, vector<8x8xbf16>, vector<8x8xf32> -> vector<8x8xf32>
    %134 = vector.extract_strided_slice %62 {offsets = [0, 24], sizes = [8, 8], strides = [1, 1]} : vector<8x32xf32> to vector<8x8xf32>
    %135 = arith.truncf %134 : vector<8x8xf32> to vector<8x8xbf16>
    %136 = vector.extract_strided_slice %69 {offsets = [0, 24], sizes = [8, 8], strides = [1, 1]} : vector<8x32xf32> to vector<8x8xf32>
    %137 = arith.truncf %136 : vector<8x8xf32> to vector<8x8xbf16>
    %138 = vector.extract_strided_slice %76 {offsets = [0, 24], sizes = [8, 8], strides = [1, 1]} : vector<8x32xf32> to vector<8x8xf32>
    %139 = arith.truncf %138 : vector<8x8xf32> to vector<8x8xbf16>
    "tpu.trace_start"() <{level = 10 : i32, message = "qd,kd->qk"}> : () -> ()
    %cst_46 = arith.constant dense<0.000000e+00> : vector<8x8xf32>
    %140 = tpu.matmul %135, %137, %cst_46 {dimension_numbers = #tpu.dot_dimension_numbers<[1], [1], [0], [0], [0, 0, 1, 0], [], []>} : vector<8x8xbf16>, vector<8x8xbf16>, vector<8x8xf32> -> vector<8x8xf32>
    "tpu.trace_stop"() : () -> ()
    %cst_47 = arith.constant dense<0xFF800000> : vector<8xf32>
    %141 = vector.multi_reduction <maximumf>, %140, %cst_47 [1] : vector<8x8xf32> to vector<8xf32>
    %142 = vector.shape_cast %141 : vector<8xf32> to vector<8x1xf32>
    %143 = vector.broadcast %142 : vector<8x1xf32> to vector<8x8xf32>
    %144 = arith.subf %140, %143 : vector<8x8xf32>
    %145 = math.exp %144 : vector<8x8xf32>
    %cst_48 = arith.constant dense<0.000000e+00> : vector<8xf32>
    %146 = vector.multi_reduction <add>, %145, %cst_48 [1] : vector<8x8xf32> to vector<8xf32>
    %147 = vector.shape_cast %146 : vector<8xf32> to vector<8x1xf32>
    %148 = tpu.reciprocal %147 {approx = true} : vector<8x1xf32> -> vector<8x1xf32>
    %149 = vector.broadcast %148 : vector<8x1xf32> to vector<8x8xf32>
    %150 = arith.mulf %145, %149 : vector<8x8xf32>
    %151 = arith.truncf %150 : vector<8x8xf32> to vector<8x8xbf16>
    %cst_49 = arith.constant dense<0.000000e+00> : vector<8x8xf32>
    %152 = tpu.matmul %151, %139, %cst_49 {dimension_numbers = #tpu.dot_dimension_numbers<[1], [0], [0], [1], [0, 0, 1, 1], [], []>} : vector<8x8xbf16>, vector<8x8xbf16>, vector<8x8xf32> -> vector<8x8xf32>
    %153 = tpu.concatenate %95, %114, %133, %152 in 1 : vector<8x8xf32>, vector<8x8xf32>, vector<8x8xf32>, vector<8x8xf32> -> vector<8x32xf32>
    %154 = arith.truncf %153 : vector<8x32xf32> to vector<8x32xbf16>
    %c0_50 = arith.constant 0 : index
    %c0_51 = arith.constant 0 : index
    %155 = vector.load %arg12[%c0_50, %c0_51] : memref<32x32xbf16, #tpu.memory_space<vmem>>, vector<32x32xbf16>
    %cst_52 = arith.constant dense<0.000000e+00> : vector<8x32xf32>
    %156 = tpu.matmul %154, %155, %cst_52 {dimension_numbers = #tpu.dot_dimension_numbers<[1], [0], [0], [1], [0, 0, 1, 1], [], []>} : vector<8x32xbf16>, vector<32x32xbf16>, vector<8x32xf32> -> vector<8x32xf32>
    %c0_53 = arith.constant 0 : index
    %c0_54 = arith.constant 0 : index
    %157 = vector.load %arg13[%c0_53, %c0_54] : memref<1x32xf32, #tpu.memory_space<vmem>>, vector<1x32xf32>
    %158 = vector.shape_cast %157 : vector<1x32xf32> to vector<32xf32>
    %159 = vector.shape_cast %158 : vector<32xf32> to vector<1x32xf32>
    %160 = vector.broadcast %159 : vector<1x32xf32> to vector<8x32xf32>
    %161 = arith.addf %156, %160 : vector<8x32xf32>
    %162 = arith.addf %1, %161 : vector<8x32xf32>
    %c0_55 = arith.constant 0 : index
    %c0_56 = arith.constant 0 : index
    %163 = vector.load %arg14[%c0_55, %c0_56] : memref<1x32xf32, #tpu.memory_space<vmem>>, vector<1x32xf32>
    %164 = vector.shape_cast %163 : vector<1x32xf32> to vector<32xf32>
    %c0_57 = arith.constant 0 : index
    %c0_58 = arith.constant 0 : index
    %165 = vector.load %arg15[%c0_57, %c0_58] : memref<1x32xf32, #tpu.memory_space<vmem>>, vector<1x32xf32>
    %166 = vector.shape_cast %165 : vector<1x32xf32> to vector<32xf32>
    %cst_59 = arith.constant dense<0.000000e+00> : vector<8xf32>
    %167 = vector.multi_reduction <add>, %162, %cst_59 [1] : vector<8x32xf32> to vector<8xf32>
    %168 = vector.shape_cast %167 : vector<8xf32> to vector<8x1xf32>
    %cst_60 = arith.constant 3.200000e+01 : f32
    %169 = vector.broadcast %cst_60 : f32 to vector<8x1xf32>
    %170 = arith.divf %168, %169 : vector<8x1xf32>
    %171 = vector.broadcast %170 : vector<8x1xf32> to vector<8x32xf32>
    %172 = arith.subf %162, %171 : vector<8x32xf32>
    %173 = arith.mulf %172, %172 : vector<8x32xf32>
    %cst_61 = arith.constant dense<0.000000e+00> : vector<8xf32>
    %174 = vector.multi_reduction <add>, %173, %cst_61 [1] : vector<8x32xf32> to vector<8xf32>
    %175 = vector.shape_cast %174 : vector<8xf32> to vector<8x1xf32>
    %cst_62 = arith.constant 3.200000e+01 : f32
    %176 = vector.broadcast %cst_62 : f32 to vector<8x1xf32>
    %177 = arith.divf %175, %176 : vector<8x1xf32>
    %cst_63 = arith.constant 9.99999974E-6 : f32
    %178 = vector.broadcast %cst_63 : f32 to vector<8x1xf32>
    %179 = arith.addf %177, %178 : vector<8x1xf32>
    %180 = math.rsqrt %179 : vector<8x1xf32>
    %181 = vector.broadcast %180 : vector<8x1xf32> to vector<8x32xf32>
    %182 = arith.mulf %172, %181 : vector<8x32xf32>
    %183 = vector.shape_cast %164 : vector<32xf32> to vector<1x32xf32>
    %184 = vector.broadcast %183 : vector<1x32xf32> to vector<8x32xf32>
    %185 = arith.mulf %182, %184 : vector<8x32xf32>
    %186 = vector.shape_cast %166 : vector<32xf32> to vector<1x32xf32>
    %187 = vector.broadcast %186 : vector<1x32xf32> to vector<8x32xf32>
    %188 = arith.addf %185, %187 : vector<8x32xf32>
    %189 = arith.truncf %188 : vector<8x32xf32> to vector<8x32xbf16>
    %cst_64 = arith.constant 0.000000e+00 : f32
    %190 = vector.broadcast %cst_64 : f32 to vector<8x32xf32>
    %c0_65 = arith.constant 0 : index
    %c0_66 = arith.constant 0 : index
    %191 = vector.load %arg16[%c0_65, %c0_66] : memref<32x64xbf16, #tpu.memory_space<vmem>>, vector<32x64xbf16>
    %cst_67 = arith.constant dense<0.000000e+00> : vector<8x64xf32>
    %192 = tpu.matmul %189, %191, %cst_67 {dimension_numbers = #tpu.dot_dimension_numbers<[1], [0], [0], [1], [0, 0, 1, 1], [], []>} : vector<8x32xbf16>, vector<32x64xbf16>, vector<8x64xf32> -> vector<8x64xf32>
    %c0_68 = arith.constant 0 : index
    %c0_69 = arith.constant 0 : index
    %193 = vector.load %arg17[%c0_68, %c0_69] : memref<1x64xf32, #tpu.memory_space<vmem>>, vector<1x64xf32>
    %194 = vector.shape_cast %193 : vector<1x64xf32> to vector<64xf32>
    %195 = vector.shape_cast %194 : vector<64xf32> to vector<1x64xf32>
    %196 = vector.broadcast %195 : vector<1x64xf32> to vector<8x64xf32>
    %197 = arith.addf %192, %196 : vector<8x64xf32>
    %cst_70 = arith.constant 5.000000e-01 : f32
    %198 = vector.broadcast %cst_70 : f32 to vector<8x64xf32>
    %199 = arith.mulf %198, %197 : vector<8x64xf32>
    %cst_71 = arith.constant 0.707106769 : f32
    %200 = vector.broadcast %cst_71 : f32 to vector<8x64xf32>
    %201 = arith.mulf %197, %200 : vector<8x64xf32>
    %202 = math.erf %201 : vector<8x64xf32>
    %cst_72 = arith.constant 1.000000e+00 : f32
    %203 = vector.broadcast %cst_72 : f32 to vector<8x64xf32>
    %204 = arith.addf %203, %202 : vector<8x64xf32>
    %205 = arith.mulf %199, %204 : vector<8x64xf32>
    %206 = arith.truncf %205 : vector<8x64xf32> to vector<8x64xbf16>
    %c0_73 = arith.constant 0 : index
    %c0_74 = arith.constant 0 : index
    %207 = vector.load %arg18[%c0_73, %c0_74] : memref<64x32xbf16, #tpu.memory_space<vmem>>, vector<64x32xbf16>
    %cst_75 = arith.constant dense<0.000000e+00> : vector<8x32xf32>
    %208 = tpu.matmul %206, %207, %cst_75 {dimension_numbers = #tpu.dot_dimension_numbers<[1], [0], [0], [1], [0, 0, 1, 1], [], []>} : vector<8x64xbf16>, vector<64x32xbf16>, vector<8x32xf32> -> vector<8x32xf32>
    %209 = arith.addf %190, %208 : vector<8x32xf32>
    %210 = arith.addf %162, %209 : vector<8x32xf32>
    %c0_76 = arith.constant 0 : index
    %c0_77 = arith.constant 0 : index
    %211 = vector.load %arg19[%c0_76, %c0_77] : memref<1x32xf32, #tpu.memory_space<vmem>>, vector<1x32xf32>
    %212 = vector.shape_cast %211 : vector<1x32xf32> to vector<32xf32>
    %213 = vector.shape_cast %212 : vector<32xf32> to vector<1x32xf32>
    %214 = vector.broadcast %213 : vector<1x32xf32> to vector<8x32xf32>
    %215 = arith.addf %210, %214 : vector<8x32xf32>
    %c0_78 = arith.constant 0 : index
    %c0_79 = arith.constant 0 : index
    %c0_80 = arith.constant 0 : index
    %216 = vector.load %arg20[%c0_78, %c0_79, %c0_80] : memref<1x8x32xf32, #tpu.memory_space<vmem>>, vector<1x8x32xf32>
    %217 = vector.shape_cast %216 : vector<1x8x32xf32> to vector<8x32xf32>
    %218 = vector.shape_cast %215 : vector<8x32xf32> to vector<1x8x32xf32>
    tpu.vector_store %arg20[%c0_78, %c0_79, %c0_80], %218 {strides = array<i32>} : memref<1x8x32xf32, #tpu.memory_space<vmem>>, vector<1x8x32xf32>,
    return
  }
  func.func @transform_0(%arg0: i32, %arg1: i32) -> (i32, i32, i32) {
    %c0_i32 = arith.constant 0 : i32
    %c0_i32_0 = arith.constant 0 : i32
    return %arg0, %arg1, %c0_i32 : i32, i32, i32
  }
  func.func @transform_1(%arg0: i32, %arg1: i32) -> (i32, i32, i32) {
    %c0_i32 = arith.constant 0 : i32
    %c0_i32_0 = arith.constant 0 : i32
    %c0_i32_1 = arith.constant 0 : i32
    return %arg0, %c0_i32, %c0_i32_0 : i32, i32, i32
  }
  func.func @transform_2(%arg0: i32, %arg1: i32) -> (i32, i32) {
    %c0_i32 = arith.constant 0 : i32
    %c0_i32_0 = arith.constant 0 : i32
    %c0_i32_1 = arith.constant 0 : i32
    return %c0_i32, %c0_i32_0 : i32, i32
  }
  func.func @transform_3(%arg0: i32, %arg1: i32) -> (i32, i32) {
    %c0_i32 = arith.constant 0 : i32
    %c0_i32_0 = arith.constant 0 : i32
    %c0_i32_1 = arith.constant 0 : i32
    return %c0_i32, %c0_i32_0 : i32, i32
  }
  func.func @transform_4(%arg0: i32, %arg1: i32) -> (i32, i32) {
    %c0_i32 = arith.constant 0 : i32
    %c0_i32_0 = arith.constant 0 : i32
    %c0_i32_1 = arith.constant 0 : i32
    return %c0_i32, %c0_i32_0 : i32, i32
  }
  func.func @transform_5(%arg0: i32, %arg1: i32) -> (i32, i32) {
    %c0_i32 = arith.constant 0 : i32
    %c0_i32_0 = arith.constant 0 : i32
    %c0_i32_1 = arith.constant 0 : i32
    return %c0_i32, %c0_i32_0 : i32, i32
  }
  func.func @transform_6(%arg0: i32, %arg1: i32) -> (i32, i32) {
    %c0_i32 = arith.constant 0 : i32
    %c0_i32_0 = arith.constant 0 : i32
    %c0_i32_1 = arith.constant 0 : i32
    return %c0_i32, %c0_i32_0 : i32, i32
  }
  func.func @transform_7(%arg0: i32, %arg1: i32) -> (i32, i32) {
    %c0_i32 = arith.constant 0 : i32
    %c0_i32_0 = arith.constant 0 : i32
    %c0_i32_1 = arith.constant 0 : i32
    return %c0_i32, %c0_i32_0 : i32, i32
  }
  func.func @transform_8(%arg0: i32, %arg1: i32) -> (i32, i32) {
    %c0_i32 = arith.constant 0 : i32
    %c0_i32_0 = arith.constant 0 : i32
    %c0_i32_1 = arith.constant 0 : i32
    return %c0_i32, %c0_i32_0 : i32, i32
  }
  func.func @transform_9(%arg0: i32, %arg1: i32) -> (i32, i32) {
    %c0_i32 = arith.constant 0 : i32
    %c0_i32_0 = arith.constant 0 : i32
    %c0_i32_1 = arith.constant 0 : i32
    return %c0_i32, %c0_i32_0 : i32, i32
  }
  func.func @transform_10(%arg0: i32, %arg1: i32) -> (i32, i32) {
    %c0_i32 = arith.constant 0 : i32
    %c0_i32_0 = arith.constant 0 : i32
    %c0_i32_1 = arith.constant 0 : i32
    return %c0_i32, %c0_i32_0 : i32, i32
  }
  func.func @transform_11(%arg0: i32, %arg1: i32) -> (i32, i32) {
    %c0_i32 = arith.constant 0 : i32
    %c0_i32_0 = arith.constant 0 : i32
    %c0_i32_1 = arith.constant 0 : i32
    return %c0_i32, %c0_i32_0 : i32, i32
  }
  func.func @transform_12(%arg0: i32, %arg1: i32) -> (i32, i32) {
    %c0_i32 = arith.constant 0 : i32
    %c0_i32_0 = arith.constant 0 : i32
    %c0_i32_1 = arith.constant 0 : i32
    return %c0_i32, %c0_i32_0 : i32, i32
  }
  func.func @transform_13(%arg0: i32, %arg1: i32) -> (i32, i32) {
    %c0_i32 = arith.constant 0 : i32
    %c0_i32_0 = arith.constant 0 : i32
    %c0_i32_1 = arith.constant 0 : i32
    return %c0_i32, %c0_i32_0 : i32, i32
  }
  func.func @transform_14(%arg0: i32, %arg1: i32) -> (i32, i32) {
    %c0_i32 = arith.constant 0 : i32
    %c0_i32_0 = arith.constant 0 : i32
    %c0_i32_1 = arith.constant 0 : i32
    return %c0_i32, %c0_i32_0 : i32, i32
  }
  func.func @transform_15(%arg0: i32, %arg1: i32) -> (i32, i32) {
    %c0_i32 = arith.constant 0 : i32
    %c0_i32_0 = arith.constant 0 : i32
    %c0_i32_1 = arith.constant 0 : i32
    return %c0_i32, %c0_i32_0 : i32, i32
  }
  func.func @transform_16(%arg0: i32, %arg1: i32) -> (i32, i32) {
    %c0_i32 = arith.constant 0 : i32
    %c0_i32_0 = arith.constant 0 : i32
    %c0_i32_1 = arith.constant 0 : i32
    return %c0_i32, %c0_i32_0 : i32, i32
  }
  func.func @transform_17(%arg0: i32, %arg1: i32) -> (i32, i32) {
    %c0_i32 = arith.constant 0 : i32
    %c0_i32_0 = arith.constant 0 : i32
    %c0_i32_1 = arith.constant 0 : i32
    return %c0_i32, %c0_i32_0 : i32, i32
  }
  func.func @transform_18(%arg0: i32, %arg1: i32) -> (i32, i32, i32) {
    %c0_i32 = arith.constant 0 : i32
    %c0_i32_0 = arith.constant 0 : i32
    return %arg0, %arg1, %c0_i32 : i32, i32, i32
  }
}

</mosaic_0001>

<llo_original>
// kernel: tpu_custom_call.1
$region0: #{tpu_custom_call.1}
  #allocation0 [shape = 'u32[]', space=smem, size = 0x4, offset = 0x4, fixed_abs, tag = 'smem constant byte address 0x4 - core index']
  #allocation1 [shape = 'u32[144,128]{1,0:T(1,128)}', space=vmem, size = 0x12000, scoped, tag = 'internal scratch']
  %s0 = inlined_call_operand.vmem [shape: f32[2,8,32], index: 0, kind: input, shape index: {}]
  %s1 = inlined_call_operand.vmem [shape: f32[2,8,32], index: 1, kind: input, shape index: {}]
  %s2 = inlined_call_operand.vmem [shape: f32[1,32], index: 2, kind: input, shape index: {}]
  %s3 = inlined_call_operand.hbm [shape: f32[1,32], index: 3, kind: input, shape index: {}]
  %s4 = inlined_call_operand.vmem [shape: bf16[32,32], index: 4, kind: input, shape index: {}]
  %s5 = inlined_call_operand.hbm [shape: f32[1,32], index: 5, kind: input, shape index: {}]
  %s6 = inlined_call_operand.hbm [shape: bf16[32,32], index: 6, kind: input, shape index: {}]
  %s7 = inlined_call_operand.hbm [shape: f32[1,32], index: 7, kind: input, shape index: {}]
  %s8 = inlined_call_operand.hbm [shape: bf16[32,32], index: 8, kind: input, shape index: {}]
  %s9 = inlined_call_operand.hbm [shape: f32[1,32], index: 9, kind: input, shape index: {}]
  %s10 = inlined_call_operand.vmem [shape: bf16[32,32], index: 10, kind: input, shape index: {}]
  %s11 = inlined_call_operand.hbm [shape: f32[1,32], index: 11, kind: input, shape index: {}]
  %s12 = inlined_call_operand.hbm [shape: f32[1,32], index: 12, kind: input, shape index: {}]
  %s13 = inlined_call_operand.hbm [shape: f32[1,32], index: 13, kind: input, shape index: {}]
  %s14 = inlined_call_operand.vmem [shape: bf16[32,64], index: 14, kind: input, shape index: {}]
  %s15 = inlined_call_operand.vmem [shape: f32[1,64], index: 15, kind: input, shape index: {}]
  %s16 = inlined_call_operand.vmem [shape: bf16[64,32], index: 16, kind: input, shape index: {}]
  %s17 = inlined_call_operand.vmem [shape: f32[1,32], index: 17, kind: input, shape index: {}]
  %s18 = inlined_call_operand.hbm [shape: f32[2,8,32], index: 18, kind: output, shape index: {}]
  %s19 = sld [smem:[#allocation0]]
  $region141: #{tpu_custom_call.1} parent=0
    _
  %s21 = ssub.s32 1, %s19
  %s22 = scalar_select 0, %s21, %s19
  $region1: #{tpu_custom_call.1} parent=0
    #allocation2 [shape = 'u8[512]{0}', space=vmem, size = 0x400, scoped, tag = 'input window, operand 3, single buffered']
    #allocation3 [shape = 's32[2]{0}', space=sflag, size = 0x8, scoped, tag = 'scoped memory for tpu_custom_call.1']
    #allocation4 [shape = 's32[2]{0}', space=sflag, size = 0x8, scoped, tag = 'scoped memory for tpu_custom_call.1']
    #allocation5 [shape = 'u8[512]{0}', space=vmem, size = 0x400, scoped, tag = 'input window, operand 5, single buffered']
    #allocation6 [shape = 's32[1]{0}', space=sflag, size = 0x4, scoped, tag = 'scoped memory for tpu_custom_call.1']
    #allocation7 [shape = 'u8[8192]{0}', space=vmem, size = 0x2000, scoped, tag = 'input window, operand 6, single buffered']
    #allocation8 [shape = 'u8[512]{0}', space=vmem, size = 0x400, scoped, tag = 'input window, operand 7, single buffered']
    #allocation9 [shape = 's32[1]{0}', space=sflag, size = 0x4, scoped, tag = 'scoped memory for tpu_custom_call.1']
    #allocation10 [shape = 'u8[8192]{0}', space=vmem, size = 0x2000, scoped, tag = 'input window, operand 8, single buffered']
    #allocation11 [shape = 'u8[512]{0}', space=vmem, size = 0x400, scoped, tag = 'input window, operand 9, single buffered']
    #allocation12 [shape = 's32[1]{0}', space=sflag, size = 0x4, scoped, tag = 'scoped memory for tpu_custom_call.1']
    #allocation13 [shape = 'u8[512]{0}', space=vmem, size = 0x400, scoped, tag = 'input window, operand 11, single buffered']
    #allocation14 [shape = 'u8[512]{0}', space=vmem, size = 0x400, scoped, tag = 'input window, operand 12, single buffered']
    #allocation15 [shape = 's32[1]{0}', space=sflag, size = 0x4, scoped, tag = 'scoped memory for tpu_custom_call.1']
    #allocation16 [shape = 'u8[512]{0}', space=vmem, size = 0x400, scoped, tag = 'input window, operand 13, single buffered']
    #allocation17 [shape = 'u8[8192]{0}', space=vmem, size = 0x2000, scoped, tag = 'output window, operand 0']
    %23 = vsyncpa [#allocation3], 0
    %24 = vsyncpa [#allocation6], 0
    %25 = vsyncpa [#allocation9], 0
    %26 = vsyncpa [#allocation12], 0
    %27 = vsyncpa [#allocation15], 0
    %28 = vsyncpa [#allocation4], 0
    %s29 = scalar_lea.sflag [#allocation4], 1
    %30 = vsyncpa %s29, 0
    loop: start=0, step=1, limit=4
    $region2: #{tpu_custom_call.1} parent=1 // loop_pre_header
      _
    $region3: #{tpu_custom_call.1} parent=1 // loop_header
      %s32 = sphi 0, %s36
      %p33 = scmp.ge.s32.totalorder %s32, 4
      %s39 = sphi 0, %s51
      %s40 = sphi 0, %s47
      %s41 = sphi 0, %s39
      %s42 = sphi 0, %s40
      %s43 = sphi 0, %s41
      %s44 = sphi 0, %s42
      %s56 = sphi 0, %s58
      %s59 = sphi 0, %s56
      %s60 = sphi 0, %s59
      %s76 = sphi 0, %s60
      %s82 = sphi 0, %s84
      %s85 = sphi 0, %s82
      %s86 = sphi 0, %s85
      %s102 = sphi 0, %s86
      %s106 = sphi 0, %s106
      %s108 = sphi 0, %s106
      %s109 = sphi 0, %s108
      %s123 = sphi 0, %s109
      %s127 = sphi 0, %s127
      %s129 = sphi 0, %s127
      %s130 = sphi 0, %s129
      %s144 = sphi 0, %s130
      %s148 = sphi 0, %s148
      %s150 = sphi 0, %s148
      %s151 = sphi 0, %s150
      %s165 = sphi 0, %s151
      %s169 = sphi 0, %s169
      %s171 = sphi 0, %s169
      %s172 = sphi 0, %s171
      %s186 = sphi 0, %s172
      %s190 = sphi 0, %s190
      %s192 = sphi 0, %s190
      %s193 = sphi 0, %s192
      %s207 = sphi 0, %s193
      %s211 = sphi 0, %s211
      %s213 = sphi 0, %s211
      %s214 = sphi 0, %s213
      %s228 = sphi 0, %s214
      %s232 = sphi 0, %s232
      %s234 = sphi 0, %s232
      %s235 = sphi 0, %s234
      %s249 = sphi 0, %s235
      %s253 = sphi 0, %s253
      %s255 = sphi 0, %s253
      %s256 = sphi 0, %s255
      %s270 = sphi 0, %s256
      %s274 = sphi 0, %s274
      %s276 = sphi 0, %s274
      %s277 = sphi 0, %s276
      %s291 = sphi 0, %s277
      %s295 = sphi 0, %s295
      %s297 = sphi 0, %s295
      %s298 = sphi 0, %s297
      %s312 = sphi 0, %s298
      %s316 = sphi 0, %s316
      %s318 = sphi 0, %s316
      %s319 = sphi 0, %s318
      %s333 = sphi 0, %s319
      %s337 = sphi 0, %s337
      %s339 = sphi 0, %s337
      %s340 = sphi 0, %s339
      %s354 = sphi 0, %s340
      %s358 = sphi 0, %s358
      %s360 = sphi 0, %s358
      %s361 = sphi 0, %s360
      %s375 = sphi 0, %s361
      %s379 = sphi 0, %s379
      %s381 = sphi 0, %s379
      %s382 = sphi 0, %s381
      %s396 = sphi 0, %s382
      %s400 = sphi 0, %s400
      %s402 = sphi 0, %s400
      %s403 = sphi 0, %s402
      %s417 = sphi 0, %s403
      %s421 = sphi 0, %s421
      %s423 = sphi 0, %s421
      %s424 = sphi 0, %s423
      %s438 = sphi 0, %s424
      %s446 = sphi 0, %s448
      %s449 = sphi 0, %s446
      %s450 = sphi 0, %s449
      %s466 = sphi 0, %s450
    $region4: #{tpu_custom_call.1} parent=1 // loop_header_branch
      %35 = sbr.rel (%p33) target = $region8
    $region5: #{tpu_custom_call.1} parent=1 // loop_body
      %s37 = ssub.s32 %s32, 1
      %s38 = ssub.s32 %s32, 2
      %s45 = sadd.s32 1, %s40
      %p46 = scmp.ge.s32.totalorder %s45, 1
      %s47 = scalar_select %p46, 0, %s45
      %s48 = sadd.s32 1, %s39
      %s49 = scalar_select %p46, %s48, %s39
      %p50 = scmp.ge.s32.totalorder %s49, 2
      %s51 = scalar_select %p50, 0, %s49
      %s52 = ssub.s32 %s39, %s51
      %s53 = ssub.s32 %s40, %s47
      %s54 = sor.u32 %s52, %s53
      %p55 = scmp.eq.s32.totalorder %s54, 0
      %s57 = sadd.s32 %s56, 1
      %s58 = scalar_select %p55, %s56, %s57
      %p61 = pneg %p55
      %p62 = scmp.eq.s32.totalorder %s32, 1
      %p63 = por %p61, %p62
      %p64 = scmp.ne.s32.totalorder %s56, %s59
      %p65 = scmp.eq.s32.totalorder %s32, 0
      %p66 = por %p64, %p65
      %p67 = scmp.ne.s32.totalorder %s56, %s59
      %p68 = scmp.eq.s32.totalorder %s37, 1
      %p69 = por %p67, %p68
      %p70 = scmp.ne.s32.totalorder %s59, %s60
      %p71 = scmp.eq.s32.totalorder %s37, 0
      %p72 = por %p70, %p71
      %p73 = scmp.ne.s32.totalorder %s59, %s60
      %p74 = scmp.eq.s32.totalorder %s38, 1
      %p75 = por %p73, %p74
      %p77 = scmp.ne.s32.totalorder %s60, %s76
      %p78 = scmp.eq.s32.totalorder %s38, 0
      %p79 = por %p77, %p78
      %s80 = ssub.s32 %s39, %s51
      %p81 = scmp.eq.s32.totalorder %s80, 0
      %s83 = sadd.s32 %s82, 1
      %s84 = scalar_select %p81, %s82, %s83
      %p87 = pneg %p81
      %p88 = scmp.eq.s32.totalorder %s32, 1
      %p89 = por %p87, %p88
      %p90 = scmp.ne.s32.totalorder %s82, %s85
      %p91 = scmp.eq.s32.totalorder %s32, 0
      %p92 = por %p90, %p91
      %p93 = scmp.ne.s32.totalorder %s82, %s85
      %p94 = scmp.eq.s32.totalorder %s37, 1
      %p95 = por %p93, %p94
      %p96 = scmp.ne.s32.totalorder %s85, %s86
      %p97 = scmp.eq.s32.totalorder %s37, 0
      %p98 = por %p96, %p97
      %p99 = scmp.ne.s32.totalorder %s85, %s86
      %p100 = scmp.eq.s32.totalorder %s38, 1
      %p101 = por %p99, %p100
      %p103 = scmp.ne.s32.totalorder %s86, %s102
      %p104 = scmp.eq.s32.totalorder %s38, 0
      %p105 = por %p103, %p104
      %s107 = sadd.s32 %s106, 1
      %p110 = scmp.eq.s32.totalorder %s32, 1
      %p111 = scmp.ne.s32.totalorder %s106, %s108
      %p112 = scmp.eq.s32.totalorder %s32, 0
      %p113 = por %p111, %p112
      %p114 = scmp.ne.s32.totalorder %s106, %s108
      %p115 = scmp.eq.s32.totalorder %s37, 1
      %p116 = por %p114, %p115
      %p117 = scmp.ne.s32.totalorder %s108, %s109
      %p118 = scmp.eq.s32.totalorder %s37, 0
      %p119 = por %p117, %p118
      %p120 = scmp.ne.s32.totalorder %s108, %s109
      %p121 = scmp.eq.s32.totalorder %s38, 1
      %p122 = por %p120, %p121
      %p124 = scmp.ne.s32.totalorder %s109, %s123
      %p125 = scmp.eq.s32.totalorder %s38, 0
      %p126 = por %p124, %p125
      %s128 = sadd.s32 %s127, 1
      %p131 = scmp.eq.s32.totalorder %s32, 1
      %p132 = scmp.ne.s32.totalorder %s127, %s129
      %p133 = scmp.eq.s32.totalorder %s32, 0
      %p134 = por %p132, %p133
      %p135 = scmp.ne.s32.totalorder %s127, %s129
      %p136 = scmp.eq.s32.totalorder %s37, 1
      %p137 = por %p135, %p136
      %p138 = scmp.ne.s32.totalorder %s129, %s130
      %p139 = scmp.eq.s32.totalorder %s37, 0
      %p140 = por %p138, %p139
      %p141 = scmp.ne.s32.totalorder %s129, %s130
      %p142 = scmp.eq.s32.totalorder %s38, 1
      %p143 = por %p141, %p142
      %p145 = scmp.ne.s32.totalorder %s130, %s144
      %p146 = scmp.eq.s32.totalorder %s38, 0
      %p147 = por %p145, %p146
      %s149 = sadd.s32 %s148, 1
      %p152 = scmp.eq.s32.totalorder %s32, 1
      %p153 = scmp.ne.s32.totalorder %s148, %s150
      %p154 = scmp.eq.s32.totalorder %s32, 0
      %p155 = por %p153, %p154
      %p156 = scmp.ne.s32.totalorder %s148, %s150
      %p157 = scmp.eq.s32.totalorder %s37, 1
      %p158 = por %p156, %p157
      %p159 = scmp.ne.s32.totalorder %s150, %s151
      %p160 = scmp.eq.s32.totalorder %s37, 0
      %p161 = por %p159, %p160
      %p162 = scmp.ne.s32.totalorder %s150, %s151
      %p163 = scmp.eq.s32.totalorder %s38, 1
      %p164 = por %p162, %p163
      %p166 = scmp.ne.s32.totalorder %s151, %s165
      %p167 = scmp.eq.s32.totalorder %s38, 0
      %p168 = por %p166, %p167
      %s170 = sadd.s32 %s169, 1
      %p173 = scmp.eq.s32.totalorder %s32, 1
      %p174 = scmp.ne.s32.totalorder %s169, %s171
      %p175 = scmp.eq.s32.totalorder %s32, 0
      %p176 = por %p174, %p175
      %p177 = scmp.ne.s32.totalorder %s169, %s171
      %p178 = scmp.eq.s32.totalorder %s37, 1
      %p179 = por %p177, %p178
      %p180 = scmp.ne.s32.totalorder %s171, %s172
      %p181 = scmp.eq.s32.totalorder %s37, 0
      %p182 = por %p180, %p181
      %p183 = scmp.ne.s32.totalorder %s171, %s172
      %p184 = scmp.eq.s32.totalorder %s38, 1
      %p185 = por %p183, %p184
      %p187 = scmp.ne.s32.totalorder %s172, %s186
      %p188 = scmp.eq.s32.totalorder %s38, 0
      %p189 = por %p187, %p188
      %s191 = sadd.s32 %s190, 1
      %p194 = scmp.eq.s32.totalorder %s32, 1
      %p195 = scmp.ne.s32.totalorder %s190, %s192
      %p196 = scmp.eq.s32.totalorder %s32, 0
      %p197 = por %p195, %p196
      %p198 = scmp.ne.s32.totalorder %s190, %s192
      %p199 = scmp.eq.s32.totalorder %s37, 1
      %p200 = por %p198, %p199
      %p201 = scmp.ne.s32.totalorder %s192, %s193
      %p202 = scmp.eq.s32.totalorder %s37, 0
      %p203 = por %p201, %p202
      %p204 = scmp.ne.s32.totalorder %s192, %s193
      %p205 = scmp.eq.s32.totalorder %s38, 1
      %p206 = por %p204, %p205
      %p208 = scmp.ne.s32.totalorder %s193, %s207
      %p209 = scmp.eq.s32.totalorder %s38, 0
      %p210 = por %p208, %p209
      %s212 = sadd.s32 %s211, 1
      %p215 = scmp.eq.s32.totalorder %s32, 1
      %p216 = scmp.ne.s32.totalorder %s211, %s213
      %p217 = scmp.eq.s32.totalorder %s32, 0
      %p218 = por %p216, %p217
      %p219 = scmp.ne.s32.totalorder %s211, %s213
      %p220 = scmp.eq.s32.totalorder %s37, 1
      %p221 = por %p219, %p220
      %p222 = scmp.ne.s32.totalorder %s213, %s214
      %p223 = scmp.eq.s32.totalorder %s37, 0
      %p224 = por %p222, %p223
      %p225 = scmp.ne.s32.totalorder %s213, %s214
      %p226 = scmp.eq.s32.totalorder %s38, 1
      %p227 = por %p225, %p226
      %p229 = scmp.ne.s32.totalorder %s214, %s228
      %p230 = scmp.eq.s32.totalorder %s38, 0
      %p231 = por %p229, %p230
      %s233 = sadd.s32 %s232, 1
      %p236 = scmp.eq.s32.totalorder %s32, 1
      %p237 = scmp.ne.s32.totalorder %s232, %s234
      %p238 = scmp.eq.s32.totalorder %s32, 0
      %p239 = por %p237, %p238
      %p240 = scmp.ne.s32.totalorder %s232, %s234
      %p241 = scmp.eq.s32.totalorder %s37, 1
      %p242 = por %p240, %p241
      %p243 = scmp.ne.s32.totalorder %s234, %s235
      %p244 = scmp.eq.s32.totalorder %s37, 0
      %p245 = por %p243, %p244
      %p246 = scmp.ne.s32.totalorder %s234, %s235
      %p247 = scmp.eq.s32.totalorder %s38, 1
      %p248 = por %p246, %p247
      %p250 = scmp.ne.s32.totalorder %s235, %s249
      %p251 = scmp.eq.s32.totalorder %s38, 0
      %p252 = por %p250, %p251
      %s254 = sadd.s32 %s253, 1
      %p257 = scmp.eq.s32.totalorder %s32, 1
      %p258 = scmp.ne.s32.totalorder %s253, %s255
      %p259 = scmp.eq.s32.totalorder %s32, 0
      %p260 = por %p258, %p259
      %p261 = scmp.ne.s32.totalorder %s253, %s255
      %p262 = scmp.eq.s32.totalorder %s37, 1
      %p263 = por %p261, %p262
      %p264 = scmp.ne.s32.totalorder %s255, %s256
      %p265 = scmp.eq.s32.totalorder %s37, 0
      %p266 = por %p264, %p265
      %p267 = scmp.ne.s32.totalorder %s255, %s256
      %p268 = scmp.eq.s32.totalorder %s38, 1
      %p269 = por %p267, %p268
      %p271 = scmp.ne.s32.totalorder %s256, %s270
      %p272 = scmp.eq.s32.totalorder %s38, 0
      %p273 = por %p271, %p272
      %s275 = sadd.s32 %s274, 1
      %p278 = scmp.eq.s32.totalorder %s32, 1
      %p279 = scmp.ne.s32.totalorder %s274, %s276
      %p280 = scmp.eq.s32.totalorder %s32, 0
      %p281 = por %p279, %p280
      %p282 = scmp.ne.s32.totalorder %s274, %s276
      %p283 = scmp.eq.s32.totalorder %s37, 1
      %p284 = por %p282, %p283
      %p285 = scmp.ne.s32.totalorder %s276, %s277
      %p286 = scmp.eq.s32.totalorder %s37, 0
      %p287 = por %p285, %p286
      %p288 = scmp.ne.s32.totalorder %s276, %s277
      %p289 = scmp.eq.s32.totalorder %s38, 1
      %p290 = por %p288, %p289
      %p292 = scmp.ne.s32.totalorder %s277, %s291
      %p293 = scmp.eq.s32.totalorder %s38, 0
      %p294 = por %p292, %p293
      %s296 = sadd.s32 %s295, 1
      %p299 = scmp.eq.s32.totalorder %s32, 1
      %p300 = scmp.ne.s32.totalorder %s295, %s297
      %p301 = scmp.eq.s32.totalorder %s32, 0
      %p302 = por %p300, %p301
      %p303 = scmp.ne.s32.totalorder %s295, %s297
      %p304 = scmp.eq.s32.totalorder %s37, 1
      %p305 = por %p303, %p304
      %p306 = scmp.ne.s32.totalorder %s297, %s298
      %p307 = scmp.eq.s32.totalorder %s37, 0
      %p308 = por %p306, %p307
      %p309 = scmp.ne.s32.totalorder %s297, %s298
      %p310 = scmp.eq.s32.totalorder %s38, 1
      %p311 = por %p309, %p310
      %p313 = scmp.ne.s32.totalorder %s298, %s312
      %p314 = scmp.eq.s32.totalorder %s38, 0
      %p315 = por %p313, %p314
      %s317 = sadd.s32 %s316, 1
      %p320 = scmp.eq.s32.totalorder %s32, 1
      %p321 = scmp.ne.s32.totalorder %s316, %s318
      %p322 = scmp.eq.s32.totalorder %s32, 0
      %p323 = por %p321, %p322
      %p324 = scmp.ne.s32.totalorder %s316, %s318
      %p325 = scmp.eq.s32.totalorder %s37, 1
      %p326 = por %p324, %p325
      %p327 = scmp.ne.s32.totalorder %s318, %s319
      %p328 = scmp.eq.s32.totalorder %s37, 0
      %p329 = por %p327, %p328
      %p330 = scmp.ne.s32.totalorder %s318, %s319
      %p331 = scmp.eq.s32.totalorder %s38, 1
      %p332 = por %p330, %p331
      %p334 = scmp.ne.s32.totalorder %s319, %s333
      %p335 = scmp.eq.s32.totalorder %s38, 0
      %p336 = por %p334, %p335
      %s338 = sadd.s32 %s337, 1
      %p341 = scmp.eq.s32.totalorder %s32, 1
      %p342 = scmp.ne.s32.totalorder %s337, %s339
      %p343 = scmp.eq.s32.totalorder %s32, 0
      %p344 = por %p342, %p343
      %p345 = scmp.ne.s32.totalorder %s337, %s339
      %p346 = scmp.eq.s32.totalorder %s37, 1
      %p347 = por %p345, %p346
      %p348 = scmp.ne.s32.totalorder %s339, %s340
      %p349 = scmp.eq.s32.totalorder %s37, 0
      %p350 = por %p348, %p349
      %p351 = scmp.ne.s32.totalorder %s339, %s340
      %p352 = scmp.eq.s32.totalorder %s38, 1
      %p353 = por %p351, %p352
      %p355 = scmp.ne.s32.totalorder %s340, %s354
      %p356 = scmp.eq.s32.totalorder %s38, 0
      %p357 = por %p355, %p356
      %s359 = sadd.s32 %s358, 1
      %p362 = scmp.eq.s32.totalorder %s32, 1
      %p363 = scmp.ne.s32.totalorder %s358, %s360
      %p364 = scmp.eq.s32.totalorder %s32, 0
      %p365 = por %p363, %p364
      %p366 = scmp.ne.s32.totalorder %s358, %s360
      %p367 = scmp.eq.s32.totalorder %s37, 1
      %p368 = por %p366, %p367
      %p369 = scmp.ne.s32.totalorder %s360, %s361
      %p370 = scmp.eq.s32.totalorder %s37, 0
      %p371 = por %p369, %p370
      %p372 = scmp.ne.s32.totalorder %s360, %s361
      %p373 = scmp.eq.s32.totalorder %s38, 1
      %p374 = por %p372, %p373
      %p376 = scmp.ne.s32.totalorder %s361, %s375
      %p377 = scmp.eq.s32.totalorder %s38, 0
      %p378 = por %p376, %p377
      %s380 = sadd.s32 %s379, 1
      %p383 = scmp.eq.s32.totalorder %s32, 1
      %p384 = scmp.ne.s32.totalorder %s379, %s381
      %p385 = scmp.eq.s32.totalorder %s32, 0
      %p386 = por %p384, %p385
      %p387 = scmp.ne.s32.totalorder %s379, %s381
      %p388 = scmp.eq.s32.totalorder %s37, 1
      %p389 = por %p387, %p388
      %p390 = scmp.ne.s32.totalorder %s381, %s382
      %p391 = scmp.eq.s32.totalorder %s37, 0
      %p392 = por %p390, %p391
      %p393 = scmp.ne.s32.totalorder %s381, %s382
      %p394 = scmp.eq.s32.totalorder %s38, 1
      %p395 = por %p393, %p394
      %p397 = scmp.ne.s32.totalorder %s382, %s396
      %p398 = scmp.eq.s32.totalorder %s38, 0
      %p399 = por %p397, %p398
      %s401 = sadd.s32 %s400, 1
      %p404 = scmp.eq.s32.totalorder %s32, 1
      %p405 = scmp.ne.s32.totalorder %s400, %s402
      %p406 = scmp.eq.s32.totalorder %s32, 0
      %p407 = por %p405, %p406
      %p408 = scmp.ne.s32.totalorder %s400, %s402
      %p409 = scmp.eq.s32.totalorder %s37, 1
      %p410 = por %p408, %p409
      %p411 = scmp.ne.s32.totalorder %s402, %s403
      %p412 = scmp.eq.s32.totalorder %s37, 0
      %p413 = por %p411, %p412
      %p414 = scmp.ne.s32.totalorder %s402, %s403
      %p415 = scmp.eq.s32.totalorder %s38, 1
      %p416 = por %p414, %p415
      %p418 = scmp.ne.s32.totalorder %s403, %s417
      %p419 = scmp.eq.s32.totalorder %s38, 0
      %p420 = por %p418, %p419
      %s422 = sadd.s32 %s421, 1
      %p425 = scmp.eq.s32.totalorder %s32, 1
      %p426 = scmp.ne.s32.totalorder %s421, %s423
      %p427 = scmp.eq.s32.totalorder %s32, 0
      %p428 = por %p426, %p427
      %p429 = scmp.ne.s32.totalorder %s421, %s423
      %p430 = scmp.eq.s32.totalorder %s37, 1
      %p431 = por %p429, %p430
      %p432 = scmp.ne.s32.totalorder %s423, %s424
      %p433 = scmp.eq.s32.totalorder %s37, 0
      %p434 = por %p432, %p433
      %p435 = scmp.ne.s32.totalorder %s423, %s424
      %p436 = scmp.eq.s32.totalorder %s38, 1
      %p437 = por %p435, %p436
      %p439 = scmp.ne.s32.totalorder %s424, %s438
      %p440 = scmp.eq.s32.totalorder %s38, 0
      %p441 = por %p439, %p440
      %s442 = ssub.s32 %s39, %s51
      %s443 = ssub.s32 %s40, %s47
      %s444 = sor.u32 %s442, %s443
      %p445 = scmp.eq.s32.totalorder %s444, 0
      %s447 = sadd.s32 %s446, 1
      %s448 = scalar_select %p445, %s446, %s447
      %p451 = pneg %p445
      %p452 = scmp.eq.s32.totalorder %s32, 1
      %p453 = por %p451, %p452
      %p454 = scmp.ne.s32.totalorder %s446, %s449
      %p455 = scmp.eq.s32.totalorder %s32, 0
      %p456 = por %p454, %p455
      %p457 = scmp.ne.s32.totalorder %s446, %s449
      %p458 = scmp.eq.s32.totalorder %s37, 1
      %p459 = por %p457, %p458
      %p460 = scmp.ne.s32.totalorder %s449, %s450
      %p461 = scmp.eq.s32.totalorder %s37, 0
      %p462 = por %p460, %p461
      %p463 = scmp.ne.s32.totalorder %s449, %s450
      %p464 = scmp.eq.s32.totalorder %s38, 1
      %p465 = por %p463, %p464
      %p467 = scmp.ne.s32.totalorder %s450, %s466
      %p468 = scmp.eq.s32.totalorder %s38, 0
      %p469 = por %p467, %p468
      %p470 = scmp.le.s32.totalorder 1, %s32
      %p471 = scmp.lt.s32.totalorder %s32, 3
      %p472 = pnand %p470, %p471
      %p473 = pneg %p472
      // Predicated region
      $region9: #{tpu_custom_call.1} parent=5 // pred_check
        _
      $region10: #{tpu_custom_call.1} parent=5 // pred_check_branch
        %475 = sbr.rel (%p472) target = $region12
      $region11: #{tpu_custom_call.1} parent=5 // pred_region
        %s476 = ssub.s32 %s32, 1
        // Predicated region
        $region13: #{tpu_custom_call.1} parent=11 // pred_check
          %p477 = pneg %p119
        $region14: #{tpu_custom_call.1} parent=11 // pred_check_branch
          %479 = sbr.rel (%p477) target = $region16
        $region15: #{tpu_custom_call.1} parent=11 // pred_region
          _
        $region16: #{tpu_custom_call.1} parent=11 // pred_fallthru
          _
        // Predicated region
        $region17: #{tpu_custom_call.1} parent=11 // pred_check
          %p480 = pneg %p140
        $region18: #{tpu_custom_call.1} parent=11 // pred_check_branch
          %482 = sbr.rel (%p480) target = $region20
        $region19: #{tpu_custom_call.1} parent=11 // pred_region
          %s484 = ssub.s32 16, 16
          %485 = vsyncadd [#allocation3], %s484
          %s487 = sshll.u32 [#allocation2], 4
          %s488 = int_to_ptr.vmem [resolvable:$true] %s487
          %490 = dma.hbm_to_vmem [thread:$0]  %s3, 16, %s488, [#allocation3]
        $region20: #{tpu_custom_call.1} parent=11 // pred_fallthru
          _
        // Predicated region
        $region21: #{tpu_custom_call.1} parent=11 // pred_check
          %p491 = pneg %p161
        $region22: #{tpu_custom_call.1} parent=11 // pred_check_branch
          %493 = sbr.rel (%p491) target = $region24
        $region23: #{tpu_custom_call.1} parent=11 // pred_region
          _
        $region24: #{tpu_custom_call.1} parent=11 // pred_fallthru
          _
        // Predicated region
        $region25: #{tpu_custom_call.1} parent=11 // pred_check
          %p494 = pneg %p182
        $region26: #{tpu_custom_call.1} parent=11 // pred_check_branch
          %496 = sbr.rel (%p494) target = $region28
        $region27: #{tpu_custom_call.1} parent=11 // pred_region
          %s498 = ssub.s32 16, 16
          %499 = vsyncadd [#allocation6], %s498
          %s501 = sshll.u32 [#allocation5], 4
          %s502 = int_to_ptr.vmem [resolvable:$true] %s501
          %504 = dma.hbm_to_vmem [thread:$0]  %s5, 16, %s502, [#allocation6]
        $region28: #{tpu_custom_call.1} parent=11 // pred_fallthru
          _
        // Predicated region
        $region29: #{tpu_custom_call.1} parent=11 // pred_check
          %p505 = pneg %p203
        $region30: #{tpu_custom_call.1} parent=11 // pred_check_branch
          %507 = sbr.rel (%p505) target = $region32
        $region31: #{tpu_custom_call.1} parent=11 // pred_region
          %s509 = ssub.s32 256, 256
          %510 = vsyncadd [#allocation6], %s509
          %s511 = sshll.u32 [#allocation7], 4
          %s512 = int_to_ptr.vmem [resolvable:$true] %s511
          %517 = dma.hbm_to_vmem [thread:$0]  %s6, 256, %s512, [#allocation6], 64, 64, 4
        $region32: #{tpu_custom_call.1} parent=11 // pred_fallthru
          _
        // Predicated region
        $region33: #{tpu_custom_call.1} parent=11 // pred_check
          %p518 = pneg %p224
        $region34: #{tpu_custom_call.1} parent=11 // pred_check_branch
          %520 = sbr.rel (%p518) target = $region36
        $region35: #{tpu_custom_call.1} parent=11 // pred_region
          %s522 = ssub.s32 16, 16
          %523 = vsyncadd [#allocation9], %s522
          %s525 = sshll.u32 [#allocation8], 4
          %s526 = int_to_ptr.vmem [resolvable:$true] %s525
          %528 = dma.hbm_to_vmem [thread:$0]  %s7, 16, %s526, [#allocation9]
        $region36: #{tpu_custom_call.1} parent=11 // pred_fallthru
          _
        // Predicated region
        $region37: #{tpu_custom_call.1} parent=11 // pred_check
          %p529 = pneg %p245
        $region38: #{tpu_custom_call.1} parent=11 // pred_check_branch
          %531 = sbr.rel (%p529) target = $region40
        $region39: #{tpu_custom_call.1} parent=11 // pred_region
          %s533 = ssub.s32 256, 256
          %534 = vsyncadd [#allocation9], %s533
          %s535 = sshll.u32 [#allocation10], 4
          %s536 = int_to_ptr.vmem [resolvable:$true] %s535
          %541 = dma.hbm_to_vmem [thread:$0]  %s8, 256, %s536, [#allocation9], 64, 64, 4
        $region40: #{tpu_custom_call.1} parent=11 // pred_fallthru
          _
        // Predicated region
        $region41: #{tpu_custom_call.1} parent=11 // pred_check
          %p542 = pneg %p266
        $region42: #{tpu_custom_call.1} parent=11 // pred_check_branch
          %544 = sbr.rel (%p542) target = $region44
        $region43: #{tpu_custom_call.1} parent=11 // pred_region
          %s546 = ssub.s32 16, 16
          %547 = vsyncadd [#allocation12], %s546
          %s549 = sshll.u32 [#allocation11], 4
          %s550 = int_to_ptr.vmem [resolvable:$true] %s549
          %552 = dma.hbm_to_vmem [thread:$0]  %s9, 16, %s550, [#allocation12]
        $region44: #{tpu_custom_call.1} parent=11 // pred_fallthru
          _
        // Predicated region
        $region45: #{tpu_custom_call.1} parent=11 // pred_check
          %p553 = pneg %p287
        $region46: #{tpu_custom_call.1} parent=11 // pred_check_branch
          %555 = sbr.rel (%p553) target = $region48
        $region47: #{tpu_custom_call.1} parent=11 // pred_region
          _
        $region48: #{tpu_custom_call.1} parent=11 // pred_fallthru
          _
        // Predicated region
        $region49: #{tpu_custom_call.1} parent=11 // pred_check
          %p556 = pneg %p308
        $region50: #{tpu_custom_call.1} parent=11 // pred_check_branch
          %558 = sbr.rel (%p556) target = $region52
        $region51: #{tpu_custom_call.1} parent=11 // pred_region
          %s560 = ssub.s32 16, 16
          %561 = vsyncadd [#allocation12], %s560
          %s563 = sshll.u32 [#allocation13], 4
          %s564 = int_to_ptr.vmem [resolvable:$true] %s563
          %566 = dma.hbm_to_vmem [thread:$0]  %s11, 16, %s564, [#allocation12]
        $region52: #{tpu_custom_call.1} parent=11 // pred_fallthru
          _
        // Predicated region
        $region53: #{tpu_custom_call.1} parent=11 // pred_check
          %p567 = pneg %p329
        $region54: #{tpu_custom_call.1} parent=11 // pred_check_branch
          %569 = sbr.rel (%p567) target = $region56
        $region55: #{tpu_custom_call.1} parent=11 // pred_region
          %s571 = ssub.s32 16, 16
          %572 = vsyncadd [#allocation15], %s571
          %s574 = sshll.u32 [#allocation14], 4
          %s575 = int_to_ptr.vmem [resolvable:$true] %s574
          %577 = dma.hbm_to_vmem [thread:$0]  %s12, 16, %s575, [#allocation15]
        $region56: #{tpu_custom_call.1} parent=11 // pred_fallthru
          _
        // Predicated region
        $region57: #{tpu_custom_call.1} parent=11 // pred_check
          %p578 = pneg %p350
        $region58: #{tpu_custom_call.1} parent=11 // pred_check_branch
          %580 = sbr.rel (%p578) target = $region60
        $region59: #{tpu_custom_call.1} parent=11 // pred_region
          %s582 = ssub.s32 16, 16
          %583 = vsyncadd [#allocation15], %s582
          %s585 = sshll.u32 [#allocation16], 4
          %s586 = int_to_ptr.vmem [resolvable:$true] %s585
          %588 = dma.hbm_to_vmem [thread:$0]  %s13, 16, %s586, [#allocation15]
        $region60: #{tpu_custom_call.1} parent=11 // pred_fallthru
          _
        // Predicated region
        $region61: #{tpu_custom_call.1} parent=11 // pred_check
          %p589 = pneg %p371
        $region62: #{tpu_custom_call.1} parent=11 // pred_check_branch
          %591 = sbr.rel (%p589) target = $region64
        $region63: #{tpu_custom_call.1} parent=11 // pred_region
          _
        $region64: #{tpu_custom_call.1} parent=11 // pred_fallthru
          _
        // Predicated region
        $region65: #{tpu_custom_call.1} parent=11 // pred_check
          %p592 = pneg %p392
        $region66: #{tpu_custom_call.1} parent=11 // pred_check_branch
          %594 = sbr.rel (%p592) target = $region68
        $region67: #{tpu_custom_call.1} parent=11 // pred_region
          _
        $region68: #{tpu_custom_call.1} parent=11 // pred_fallthru
          _
        // Predicated region
        $region69: #{tpu_custom_call.1} parent=11 // pred_check
          %p595 = pneg %p413
        $region70: #{tpu_custom_call.1} parent=11 // pred_check_branch
          %597 = sbr.rel (%p595) target = $region72
        $region71: #{tpu_custom_call.1} parent=11 // pred_region
          _
        $region72: #{tpu_custom_call.1} parent=11 // pred_fallthru
          _
        // Predicated region
        $region73: #{tpu_custom_call.1} parent=11 // pred_check
          %p598 = pneg %p434
        $region74: #{tpu_custom_call.1} parent=11 // pred_check_branch
          %600 = sbr.rel (%p598) target = $region76
        $region75: #{tpu_custom_call.1} parent=11 // pred_region
          _
        $region76: #{tpu_custom_call.1} parent=11 // pred_fallthru
          _
      $region12: #{tpu_custom_call.1} parent=5 // pred_fallthru
        _
      %p601 = scmp.lt.s32.totalorder %s32, 2
      // Predicated region
      $region77: #{tpu_custom_call.1} parent=5 // pred_check
        %p602 = pneg %p601
      $region78: #{tpu_custom_call.1} parent=5 // pred_check_branch
        %604 = sbr.rel (%p602) target = $region80
      $region79: #{tpu_custom_call.1} parent=5 // pred_region
        // Predicated region
        $region81: #{tpu_custom_call.1} parent=79 // pred_check
          %p605 = pneg %p66
        $region82: #{tpu_custom_call.1} parent=79 // pred_check_branch
          %607 = sbr.rel (%p605) target = $region84
        $region83: #{tpu_custom_call.1} parent=79 // pred_region
          %p608 = scmp.lt.s32.totalorder %s39, 1
          %s609 = scalar_select %p608, %s39, 1
          %p610 = scmp.lt.s32.totalorder %s40, 0
          %s611 = scalar_select %p610, %s40, 0
          %s612 = sadd.s32 %s611, %s609
          %s613 = smul.addr %s612, 8
          %s614 = scalar_lea.vmem %s0, %s613
        $region84: #{tpu_custom_call.1} parent=79 // pred_fallthru
          _
        // Predicated region
        $region85: #{tpu_custom_call.1} parent=79 // pred_check
          %p615 = pneg %p92
        $region86: #{tpu_custom_call.1} parent=79 // pred_check_branch
          %617 = sbr.rel (%p615) target = $region88
        $region87: #{tpu_custom_call.1} parent=79 // pred_region
          %p618 = scmp.lt.s32.totalorder %s39, 1
          %s619 = scalar_select %p618, %s39, 1
          %s620 = smul.addr %s619, 8
          %s621 = scalar_lea.vmem %s1, %s620
        $region88: #{tpu_custom_call.1} parent=79 // pred_fallthru
          _
      $region80: #{tpu_custom_call.1} parent=5 // pred_fallthru
        _
      %p622 = scmp.le.s32.totalorder 1, %s32
      %p623 = scmp.lt.s32.totalorder %s32, 3
      %p624 = pnand %p622, %p623
      %p625 = pneg %p624
      // Predicated region
      $region89: #{tpu_custom_call.1} parent=5 // pred_check
        _
      $region90: #{tpu_custom_call.1} parent=5 // pred_check_branch
        %627 = sbr.rel (%p624) target = $region92
      $region91: #{tpu_custom_call.1} parent=5 // pred_region
        %s628 = ssub.s32 %s32, 1
        // Predicated region
        $region93: #{tpu_custom_call.1} parent=91 // pred_check
          %p629 = pneg %p140
        $region94: #{tpu_custom_call.1} parent=91 // pred_check_branch
          %631 = sbr.rel (%p629) target = $region96
        $region95: #{tpu_custom_call.1} parent=91 // pred_region
          %632 = dma.done [#allocation3], 16
        $region96: #{tpu_custom_call.1} parent=91 // pred_fallthru
          _
        // Predicated region
        $region97: #{tpu_custom_call.1} parent=91 // pred_check
          %p633 = pneg %p182
        $region98: #{tpu_custom_call.1} parent=91 // pred_check_branch
          %635 = sbr.rel (%p633) target = $region100
        $region99: #{tpu_custom_call.1} parent=91 // pred_region
          %636 = dma.done [#allocation6], 16
        $region100: #{tpu_custom_call.1} parent=91 // pred_fallthru
          _
        // Predicated region
        $region101: #{tpu_custom_call.1} parent=91 // pred_check
          %p637 = pneg %p203
        $region102: #{tpu_custom_call.1} parent=91 // pred_check_branch
          %639 = sbr.rel (%p637) target = $region104
        $region103: #{tpu_custom_call.1} parent=91 // pred_region
          %640 = dma.done [#allocation6], 256
        $region104: #{tpu_custom_call.1} parent=91 // pred_fallthru
          _
        // Predicated region
        $region105: #{tpu_custom_call.1} parent=91 // pred_check
          %p641 = pneg %p224
        $region106: #{tpu_custom_call.1} parent=91 // pred_check_branch
          %643 = sbr.rel (%p641) target = $region108
        $region107: #{tpu_custom_call.1} parent=91 // pred_region
          %644 = dma.done [#allocation9], 16
        $region108: #{tpu_custom_call.1} parent=91 // pred_fallthru
          _
        // Predicated region
        $region109: #{tpu_custom_call.1} parent=91 // pred_check
          %p645 = pneg %p245
        $region110: #{tpu_custom_call.1} parent=91 // pred_check_branch
          %647 = sbr.rel (%p645) target = $region112
        $region111: #{tpu_custom_call.1} parent=91 // pred_region
          %648 = dma.done [#allocation9], 256
        $region112: #{tpu_custom_call.1} parent=91 // pred_fallthru
          _
        // Predicated region
        $region113: #{tpu_custom_call.1} parent=91 // pred_check
          %p649 = pneg %p266
        $region114: #{tpu_custom_call.1} parent=91 // pred_check_branch
          %651 = sbr.rel (%p649) target = $region116
        $region115: #{tpu_custom_call.1} parent=91 // pred_region
          %652 = dma.done [#allocation12], 16
        $region116: #{tpu_custom_call.1} parent=91 // pred_fallthru
          _
        // Predicated region
        $region117: #{tpu_custom_call.1} parent=91 // pred_check
          %p653 = pneg %p308
        $region118: #{tpu_custom_call.1} parent=91 // pred_check_branch
          %655 = sbr.rel (%p653) target = $region120
        $region119: #{tpu_custom_call.1} parent=91 // pred_region
          %656 = dma.done [#allocation12], 16
        $region120: #{tpu_custom_call.1} parent=91 // pred_fallthru
          _
        // Predicated region
        $region121: #{tpu_custom_call.1} parent=91 // pred_check
          %p657 = pneg %p329
        $region122: #{tpu_custom_call.1} parent=91 // pred_check_branch
          %659 = sbr.rel (%p657) target = $region124
        $region123: #{tpu_custom_call.1} parent=91 // pred_region
          %660 = dma.done [#allocation15], 16
        $region124: #{tpu_custom_call.1} parent=91 // pred_fallthru
          _
        // Predicated region
        $region125: #{tpu_custom_call.1} parent=91 // pred_check
          %p661 = pneg %p350
        $region126: #{tpu_custom_call.1} parent=91 // pred_check_branch
          %663 = sbr.rel (%p661) target = $region128
        $region127: #{tpu_custom_call.1} parent=91 // pred_region
          %664 = dma.done [#allocation15], 16
        $region128: #{tpu_custom_call.1} parent=91 // pred_fallthru
          _
        %p665 = scmp.lt.s32.totalorder %s41, 1
        %s666 = scalar_select %p665, %s41, 1
        %p667 = scmp.lt.s32.totalorder %s42, 0
        %s668 = scalar_select %p667, %s42, 0
        %s669 = sadd.s32 %s668, %s666
        %s670 = smul.addr %s669, 8
        %s671 = scalar_lea.vmem %s0, %s670
        %p672 = pneg %p72
        %p673 = pneg %p69
        %p674 = scmp.lt.s32.totalorder %s41, 1
        %s675 = scalar_select %p674, %s41, 1
        %s676 = smul.addr %s675, 8
        %s677 = scalar_lea.vmem %s1, %s676
        %p678 = pneg %p98
        %p679 = pneg %p95
        %p680 = pneg %p119
        %p681 = pneg %p116
        %p682 = pneg %p140
        %p683 = pneg %p137
        %p684 = pneg %p161
        %p685 = pneg %p158
        %p686 = pneg %p182
        %p687 = pneg %p179
        %p688 = pneg %p203
        %p689 = pneg %p200
        %p690 = pneg %p224
        %p691 = pneg %p221
        %p692 = pneg %p245
        %p693 = pneg %p242
        %p694 = pneg %p266
        %p695 = pneg %p263
        %p696 = pneg %p287
        %p697 = pneg %p284
        %p698 = pneg %p308
        %p699 = pneg %p305
        %p700 = pneg %p329
        %p701 = pneg %p326
        %p702 = pneg %p350
        %p703 = pneg %p347
        %p704 = pneg %p371
        %p705 = pneg %p368
        %p706 = pneg %p392
        %p707 = pneg %p389
        %p708 = pneg %p413
        %p709 = pneg %p410
        %p710 = pneg %p434
        %p711 = pneg %p431
        %p712 = pneg %p462
        %p713 = pneg %p459
        %s714 = sand.u32 %s449, 1
        %s715 = scalar_lea.sflag [#allocation4], %s714
        %s716 = sand.u32 %s449, 1
        %s717 = smul.addr %s716, 8
        %s718 = scalar_lea.vmem [#allocation17], %s717
        %p719 = scmp.lt.s32.totalorder %s41, 1
        %s720 = scalar_select %p719, %s41, 1
        %p721 = scmp.lt.s32.totalorder %s42, 0
        %s722 = scalar_select %p721, %s42, 0
        %s723 = sadd.s32 %s722, %s720
        %s724 = smul.addr %s723, 8
        %s725 = scalar_lea.vmem %s0, %s724
        %p726 = scmp.lt.s32.totalorder %s41, 1
        %s727 = scalar_select %p726, %s41, 1
        %s728 = smul.addr %s727, 8
        %s729 = scalar_lea.vmem %s1, %s728
        %v731 = vld [vmem:[%s725] sm:$0xff]
        %v732 = vld [vmem:[%s729] sm:$0xff]
        %v733 = vld [vmem:[%s2] sm:$0x1]
        %v734 = vld [vmem:[#allocation2] sm:$0x1]
        %vm735 = vcmask 261120
        %v736 = vsel %vm735, %v731, 0.0
        %737 = vadd.xlane.f32.xlu0 %v736
        %v738 = vpop.xlane.xlu0 %737
        %v739 = vrcp.pop 32.0
        %v740 = vmul.f32 %v738, %v739
        %v741 = vsub.f32 %v731, %v740
        %v742 = vmul.f32 %v741, %v741
        %v743 = vsel %vm735, %v742, 0.0
        %744 = vadd.xlane.f32.xlu0 %v743
        %v745 = vpop.xlane.xlu0 %744
        %v746 = vmul.f32 %v745, %v739
        %v747 = vadd.f32 %v746, 1e-05
        %v748 = vrsqrt.pop %v747
        %v749 = vmul.f32 %v741, %v748
        %v751 = vlaneseq
        %v752 = vshrl.u32 %v751, 7
        %v753 = vsub.s32 0, %v752
        %v754 = vrot.slane %v733, %v753
        %v756 = vmul.f32 %v749, %v754
        %v758 = vlaneseq
        %v759 = vshrl.u32 %v758, 7
        %v760 = vsub.s32 0, %v759
        %v761 = vrot.slane %v734, %v760
        %v763 = vadd.f32 %v756, %v761
        %v764 = vpack.c.bf16 %v763, %v763
        %v765 = vsel %vm735, %v732, 0.0
        %766 = vadd.xlane.f32.xlu0 %v765
        %v767 = vpop.xlane.xlu0 %766
        %v768 = vmul.f32 %v767, %v739
        %v769 = vsub.f32 %v732, %v768
        %v770 = vmul.f32 %v769, %v769
        %v771 = vsel %vm735, %v770, 0.0
        %772 = vadd.xlane.f32.xlu0 %v771
        %v773 = vpop.xlane.xlu0 %772
        %v774 = vmul.f32 %v773, %v739
        %v775 = vadd.f32 %v774, 1e-05
        %v776 = vrsqrt.pop %v775
        %v777 = vmul.f32 %v769, %v776
        %v778 = vmul.f32 %v777, %v754
        %v779 = vadd.f32 %v778, %v761
        %v780 = vpack.c.bf16 %v779, %v779
        %v781 = vld [vmem:[%s4] sm:$0xf]
        %v782 = vld [vmem:[%s4 + $0x4] sm:$0xf]
        %v783 = vld [vmem:[%s4 + $0x8] sm:$0xf]
        %v784 = vld [vmem:[%s4 + $0xc] sm:$0xf]
        %v785 = vld [vmem:[#allocation5] sm:$0x1]
        %v787 = vlaneseq
        %v788 = vshrl.u32 %v787, 7
        %v789 = vsub.s32 0, %v788
        %v790 = vrot.slane %v785, %v789
        %v796 = vunpack.c.l.b16 %v781
        %v797 = vunpack.c.l.b16 %v782
        %v798 = vunpack.c.l.b16 %v783
        %v799 = vunpack.c.l.b16 %v784
        %v800 = vpack.c.b16 %v797, %v796
        %v801 = vpack.c.b16 %v799, %v798
        %v805 = vsel %vm735, %v764, 0
        %807 = vmatprep.subr.bf16.mxu0 0
        %808 = vmatpush1.bf16.msra.mxu0 %v800
        %809 = vmatprep.subr.bf16.mxu0 0
        %810 = vmatpush1.bf16.msra.mxu0 %v801
        %811 = vmatprep.subr.bf16.mxu0 0
        %812 = vmatpush1.bf16.msra.mxu0 0
        %813 = vmatprep.subr.bf16.mxu0 0
        %814 = vmatpush1.bf16.msra.mxu0 0
        %815 = vmatprep.subr.bf16.mxu0 0
        %816 = vmatpush1.bf16.msra.mxu0 0
        %817 = vmatprep.subr.bf16.mxu0 0
        %818 = vmatpush1.bf16.msra.mxu0 0
        %819 = vmatprep.subr.bf16.mxu0 0
        %820 = vmatpush1.bf16.msra.mxu0 0
        %821 = vmatprep.subr.bf16.mxu0 0
        %822 = vmatpush1.bf16.msra.mxu0 0
        %823 = vmatprep.subr.bf16.mxu0 0
        %824 = vmatpush1.bf16.msra.mxu0 0
        %825 = vmatprep.subr.bf16.mxu0 0
        %826 = vmatpush1.bf16.msra.mxu0 0
        %827 = vmatprep.subr.bf16.mxu0 0
        %828 = vmatpush1.bf16.msra.mxu0 0
        %829 = vmatprep.subr.bf16.mxu0 0
        %830 = vmatpush1.bf16.msra.mxu0 0
        %831 = vmatprep.subr.bf16.mxu0 0
        %832 = vmatpush1.bf16.msra.mxu0 0
        %833 = vmatprep.subr.bf16.mxu0 0
        %834 = vmatpush1.bf16.msra.mxu0 0
        %835 = vmatprep.subr.bf16.mxu0 0
        %836 = vmatpush1.bf16.msra.mxu0 0
        %837 = vmatprep.subr.bf16.mxu0 0
        %838 = vmatpush1.bf16.msra.mxu0 0
        %839 = vmatprep.mubr.bf16.mxu0 0
        %840 = vmatmul.mubr.bf16.gmra.mrb[0].mxu0 %v805
        %v841 = vpop.f32.mrb[0].mxu0
        %v842 = vadd.f32 %v790, %v841
        %v843 = vpop.f32.mrb[0].mxu0
        %v844 = vpop.f32.mrb[0].mxu0
        %v845 = vpop.f32.mrb[0].mxu0
        %846 = vdwg.mxu0
        %v847 = vmul.f32 %v842, 0.35355338
        %v848 = vld [vmem:[#allocation7] sm:$0xf]
        %v849 = vld [vmem:[#allocation7 + $0x4] sm:$0xf]
        %v850 = vld [vmem:[#allocation7 + $0x8] sm:$0xf]
        %v851 = vld [vmem:[#allocation7 + $0xc] sm:$0xf]
        %v852 = vld [vmem:[#allocation8] sm:$0x1]
        %v854 = vlaneseq
        %v855 = vshrl.u32 %v854, 7
        %v856 = vsub.s32 0, %v855
        %v857 = vrot.slane %v852, %v856
        %v863 = vunpack.c.l.b16 %v848
        %v864 = vunpack.c.l.b16 %v849
        %v865 = vunpack.c.l.b16 %v850
        %v866 = vunpack.c.l.b16 %v851
        %v867 = vpack.c.b16 %v864, %v863
        %v868 = vpack.c.b16 %v866, %v865
        %v872 = vsel %vm735, %v780, 0
        %874 = vmatprep.subr.bf16.mxu0 0
        %875 = vmatpush1.bf16.msra.mxu0 %v867
        %876 = vmatprep.subr.bf16.mxu0 0
        %877 = vmatpush1.bf16.msra.mxu0 %v868
        %878 = vmatprep.subr.bf16.mxu0 0
        %879 = vmatpush1.bf16.msra.mxu0 0
        %880 = vmatprep.subr.bf16.mxu0 0
        %881 = vmatpush1.bf16.msra.mxu0 0
        %882 = vmatprep.subr.bf16.mxu0 0
        %883 = vmatpush1.bf16.msra.mxu0 0
        %884 = vmatprep.subr.bf16.mxu0 0
        %885 = vmatpush1.bf16.msra.mxu0 0
        %886 = vmatprep.subr.bf16.mxu0 0
        %887 = vmatpush1.bf16.msra.mxu0 0
        %888 = vmatprep.subr.bf16.mxu0 0
        %889 = vmatpush1.bf16.msra.mxu0 0
        %890 = vmatprep.subr.bf16.mxu0 0
        %891 = vmatpush1.bf16.msra.mxu0 0
        %892 = vmatprep.subr.bf16.mxu0 0
        %893 = vmatpush1.bf16.msra.mxu0 0
        %894 = vmatprep.subr.bf16.mxu0 0
        %895 = vmatpush1.bf16.msra.mxu0 0
        %896 = vmatprep.subr.bf16.mxu0 0
        %897 = vmatpush1.bf16.msra.mxu0 0
        %898 = vmatprep.subr.bf16.mxu0 0
        %899 = vmatpush1.bf16.msra.mxu0 0
        %900 = vmatprep.subr.bf16.mxu0 0
        %901 = vmatpush1.bf16.msra.mxu0 0
        %902 = vmatprep.subr.bf16.mxu0 0
        %903 = vmatpush1.bf16.msra.mxu0 0
        %904 = vmatprep.subr.bf16.mxu0 0
        %905 = vmatpush1.bf16.msra.mxu0 0
        %906 = vmatprep.mubr.bf16.mxu0 0
        %907 = vmatmul.mubr.bf16.gmra.mrb[0].mxu0 %v872
        %v908 = vpop.f32.mrb[0].mxu0
        %v909 = vadd.f32 %v857, %v908
        %v910 = vpop.f32.mrb[0].mxu0
        %v911 = vpop.f32.mrb[0].mxu0
        %v912 = vpop.f32.mrb[0].mxu0
        %913 = vdwg.mxu0
        %v914 = vld [vmem:[#allocation10] sm:$0xf]
        %v915 = vld [vmem:[#allocation10 + $0x4] sm:$0xf]
        %v916 = vld [vmem:[#allocation10 + $0x8] sm:$0xf]
        %v917 = vld [vmem:[#allocation10 + $0xc] sm:$0xf]
        %v918 = vld [vmem:[#allocation11] sm:$0x1]
        %v920 = vlaneseq
        %v921 = vshrl.u32 %v920, 7
        %v922 = vsub.s32 0, %v921
        %v923 = vrot.slane %v918, %v922
        %v929 = vunpack.c.l.b16 %v914
        %v930 = vunpack.c.l.b16 %v915
        %v931 = vunpack.c.l.b16 %v916
        %v932 = vunpack.c.l.b16 %v917
        %v933 = vpack.c.b16 %v930, %v929
        %v934 = vpack.c.b16 %v932, %v931
        %937 = vmatprep.subr.bf16.mxu0 0
        %938 = vmatpush1.bf16.msra.mxu0 %v933
        %939 = vmatprep.subr.bf16.mxu0 0
        %940 = vmatpush1.bf16.msra.mxu0 %v934
        %941 = vmatprep.subr.bf16.mxu0 0
        %942 = vmatpush1.bf16.msra.mxu0 0
        %943 = vmatprep.subr.bf16.mxu0 0
        %944 = vmatpush1.bf16.msra.mxu0 0
        %945 = vmatprep.subr.bf16.mxu0 0
        %946 = vmatpush1.bf16.msra.mxu0 0
        %947 = vmatprep.subr.bf16.mxu0 0
        %948 = vmatpush1.bf16.msra.mxu0 0
        %949 = vmatprep.subr.bf16.mxu0 0
        %950 = vmatpush1.bf16.msra.mxu0 0
        %951 = vmatprep.subr.bf16.mxu0 0
        %952 = vmatpush1.bf16.msra.mxu0 0
        %953 = vmatprep.subr.bf16.mxu0 0
        %954 = vmatpush1.bf16.msra.mxu0 0
        %955 = vmatprep.subr.bf16.mxu0 0
        %956 = vmatpush1.bf16.msra.mxu0 0
        %957 = vmatprep.subr.bf16.mxu0 0
        %958 = vmatpush1.bf16.msra.mxu0 0
        %959 = vmatprep.subr.bf16.mxu0 0
        %960 = vmatpush1.bf16.msra.mxu0 0
        %961 = vmatprep.subr.bf16.mxu0 0
        %962 = vmatpush1.bf16.msra.mxu0 0
        %963 = vmatprep.subr.bf16.mxu0 0
        %964 = vmatpush1.bf16.msra.mxu0 0
        %965 = vmatprep.subr.bf16.mxu0 0
        %966 = vmatpush1.bf16.msra.mxu0 0
        %967 = vmatprep.subr.bf16.mxu0 0
        %968 = vmatpush1.bf16.msra.mxu0 0
        %969 = vmatprep.mubr.bf16.mxu0 0
        %970 = vmatmul.mubr.bf16.gmra.mrb[0].mxu0 %v872
        %v971 = vpop.f32.mrb[0].mxu0
        %v972 = vadd.f32 %v923, %v971
        %v973 = vpop.f32.mrb[0].mxu0
        %v974 = vpop.f32.mrb[0].mxu0
        %v975 = vpop.f32.mrb[0].mxu0
        %976 = vdwg.mxu0
        %v977 = vpack.c.bf16 %v847, %v847
        %v978 = vpack.c.bf16 %v909, %v909
        %v979 = vpack.c.bf16 %v972, %v972
        %vm980 = vcmask 64512
        %v982 = vsel %vm980, %v977, 0
        %v985 = vsel %vm980, %v978, 0
        %987 = vmatprep.subr.bf16.mxu0 0
        %988 = vmatpush1.bf16.xpose.msra.mxu0 %v985
        %989 = vmatprep.subr.bf16.mxu0 0
        %990 = vmatpush1.bf16.xpose.msra.mxu0 0
        %991 = vmatprep.subr.bf16.mxu0 0
        %992 = vmatpush1.bf16.xpose.msra.mxu0 0
        %993 = vmatprep.subr.bf16.mxu0 0
        %994 = vmatpush1.bf16.xpose.msra.mxu0 0
        %995 = vmatprep.subr.bf16.mxu0 0
        %996 = vmatpush1.bf16.xpose.msra.mxu0 0
        %997 = vmatprep.subr.bf16.mxu0 0
        %998 = vmatpush1.bf16.xpose.msra.mxu0 0
        %999 = vmatprep.subr.bf16.mxu0 0
        %1000 = vmatpush1.bf16.xpose.msra.mxu0 0
        %1001 = vmatprep.subr.bf16.mxu0 0
        %1002 = vmatpush1.bf16.xpose.msra.mxu0 0
        %1003 = vmatprep.subr.bf16.mxu0 0
        %1004 = vmatpush1.bf16.xpose.msra.mxu0 0
        %1005 = vmatprep.subr.bf16.mxu0 0
        %1006 = vmatpush1.bf16.xpose.msra.mxu0 0
        %1007 = vmatprep.subr.bf16.mxu0 0
        %1008 = vmatpush1.bf16.xpose.msra.mxu0 0
        %1009 = vmatprep.subr.bf16.mxu0 0
        %1010 = vmatpush1.bf16.xpose.msra.mxu0 0
        %1011 = vmatprep.subr.bf16.mxu0 0
        %1012 = vmatpush1.bf16.xpose.msra.mxu0 0
        %1013 = vmatprep.subr.bf16.mxu0 0
        %1014 = vmatpush1.bf16.xpose.msra.mxu0 0
        %1015 = vmatprep.subr.bf16.mxu0 0
        %1016 = vmatpush1.bf16.xpose.msra.mxu0 0
        %1017 = vmatprep.subr.bf16.mxu0 0
        %1018 = vmatpush1.bf16.xpose.msra.mxu0 0
        %1019 = vmatprep.mubr.bf16.mxu0 0
        %1020 = vmatmul.mubr.bf16.gmra.mrb[0].mxu0 %v982
        %v1021 = vpop.f32.mrb[0].mxu0
        %v1022 = vadd.f32 0.0, %v1021
        %v1023 = vpop.f32.mrb[0].mxu0
        %v1024 = vpop.f32.mrb[0].mxu0
        %v1025 = vpop.f32.mrb[0].mxu0
        %1026 = vdwg.mxu0
        %v1027 = vsel %vm980, %v1022, -inf
        %1028 = vmax.xlane.f32.xlu0 %v1027
        %v1029 = vpop.xlane.xlu0 %1028
        %v1030 = vsub.f32 %v1022, %v1029
        %v1031 = vmul.f32 %v1030, 1.442695
        %v1032 = vpow.pop %v1031
        %v1033 = vsel %vm980, %v1032, 0.0
        %1034 = vadd.xlane.f32.xlu0 %v1033
        %v1035 = vpop.xlane.xlu0 %1034
        %v1036 = vrcp.pop %v1035
        %v1037 = vmul.f32 %v1032, %v1036
        %v1038 = vpack.c.bf16 %v1037, %v1037
        %v1040 = vsel %vm980, %v1038, 0
        %vm1042 = vcmask 1043456
        %v1044 = vsel %vm1042, %v979, 0
        %1046 = vmatprep.subr.bf16.mxu0 0
        %1047 = vmatpush1.bf16.msra.mxu0 %v1044
        %1048 = vmatprep.subr.bf16.mxu0 0
        %1049 = vmatpush1.bf16.msra.mxu0 0
        %1050 = vmatprep.subr.bf16.mxu0 0
        %1051 = vmatpush1.bf16.msra.mxu0 0
        %1052 = vmatprep.subr.bf16.mxu0 0
        %1053 = vmatpush1.bf16.msra.mxu0 0
        %1054 = vmatprep.subr.bf16.mxu0 0
        %1055 = vmatpush1.bf16.msra.mxu0 0
        %1056 = vmatprep.subr.bf16.mxu0 0
        %1057 = vmatpush1.bf16.msra.mxu0 0
        %1058 = vmatprep.subr.bf16.mxu0 0
        %1059 = vmatpush1.bf16.msra.mxu0 0
        %1060 = vmatprep.subr.bf16.mxu0 0
        %1061 = vmatpush1.bf16.msra.mxu0 0
        %1062 = vmatprep.subr.bf16.mxu0 0
        %1063 = vmatpush1.bf16.msra.mxu0 0
        %1064 = vmatprep.subr.bf16.mxu0 0
        %1065 = vmatpush1.bf16.msra.mxu0 0
        %1066 = vmatprep.subr.bf16.mxu0 0
        %1067 = vmatpush1.bf16.msra.mxu0 0
        %1068 = vmatprep.subr.bf16.mxu0 0
        %1069 = vmatpush1.bf16.msra.mxu0 0
        %1070 = vmatprep.subr.bf16.mxu0 0
        %1071 = vmatpush1.bf16.msra.mxu0 0
        %1072 = vmatprep.subr.bf16.mxu0 0
        %1073 = vmatpush1.bf16.msra.mxu0 0
        %1074 = vmatprep.subr.bf16.mxu0 0
        %1075 = vmatpush1.bf16.msra.mxu0 0
        %1076 = vmatprep.subr.bf16.mxu0 0
        %1077 = vmatpush1.bf16.msra.mxu0 0
        %1078 = vmatprep.mubr.bf16.mxu0 0
        %1079 = vmatmul.mubr.bf16.gmra.mrb[0].mxu0 %v1040
        %v1080 = vpop.f32.mrb[0].mxu0
        %v1081 = vadd.f32 0.0, %v1080
        %v1082 = vpop.f32.mrb[0].mxu0
        %v1083 = vpop.f32.mrb[0].mxu0
        %v1084 = vpop.f32.mrb[0].mxu0
        %1085 = vdwg.mxu0
        %1087 = vrot.lane.b32.xlu0 %v977, 120
        %v1088 = vpop.permute.xlu0 %1087
        %1090 = vrot.lane.b32.xlu0 %v978, 120
        %v1091 = vpop.permute.xlu0 %1090
        %v1093 = vsel %vm980, %v1088, 0
        %v1096 = vsel %vm980, %v1091, 0
        %1098 = vmatprep.subr.bf16.mxu0 0
        %1099 = vmatpush1.bf16.xpose.msra.mxu0 %v1096
        %1100 = vmatprep.subr.bf16.mxu0 0
        %1101 = vmatpush1.bf16.xpose.msra.mxu0 0
        %1102 = vmatprep.subr.bf16.mxu0 0
        %1103 = vmatpush1.bf16.xpose.msra.mxu0 0
        %1104 = vmatprep.subr.bf16.mxu0 0
        %1105 = vmatpush1.bf16.xpose.msra.mxu0 0
        %1106 = vmatprep.subr.bf16.mxu0 0
        %1107 = vmatpush1.bf16.xpose.msra.mxu0 0
        %1108 = vmatprep.subr.bf16.mxu0 0
        %1109 = vmatpush1.bf16.xpose.msra.mxu0 0
        %1110 = vmatprep.subr.bf16.mxu0 0
        %1111 = vmatpush1.bf16.xpose.msra.mxu0 0
        %1112 = vmatprep.subr.bf16.mxu0 0
        %1113 = vmatpush1.bf16.xpose.msra.mxu0 0
        %1114 = vmatprep.subr.bf16.mxu0 0
        %1115 = vmatpush1.bf16.xpose.msra.mxu0 0
        %1116 = vmatprep.subr.bf16.mxu0 0
        %1117 = vmatpush1.bf16.xpose.msra.mxu0 0
        %1118 = vmatprep.subr.bf16.mxu0 0
        %1119 = vmatpush1.bf16.xpose.msra.mxu0 0
        %1120 = vmatprep.subr.bf16.mxu0 0
        %1121 = vmatpush1.bf16.xpose.msra.mxu0 0
        %1122 = vmatprep.subr.bf16.mxu0 0
        %1123 = vmatpush1.bf16.xpose.msra.mxu0 0
        %1124 = vmatprep.subr.bf16.mxu0 0
        %1125 = vmatpush1.bf16.xpose.msra.mxu0 0
        %1126 = vmatprep.subr.bf16.mxu0 0
        %1127 = vmatpush1.bf16.xpose.msra.mxu0 0
        %1128 = vmatprep.subr.bf16.mxu0 0
        %1129 = vmatpush1.bf16.xpose.msra.mxu0 0
        %1130 = vmatprep.mubr.bf16.mxu0 0
        %1131 = vmatmul.mubr.bf16.gmra.mrb[0].mxu0 %v1093
        %v1132 = vpop.f32.mrb[0].mxu0
        %v1133 = vadd.f32 0.0, %v1132
        %v1134 = vpop.f32.mrb[0].mxu0
        %v1135 = vpop.f32.mrb[0].mxu0
        %v1136 = vpop.f32.mrb[0].mxu0
        %1137 = vdwg.mxu0
        %v1138 = vsel %vm980, %v1133, -inf
        %1139 = vmax.xlane.f32.xlu0 %v1138
        %v1140 = vpop.xlane.xlu0 %1139
        %v1141 = vsub.f32 %v1133, %v1140
        %v1142 = vmul.f32 %v1141, 1.442695
        %v1143 = vpow.pop %v1142
        %v1144 = vsel %vm980, %v1143, 0.0
        %1145 = vadd.xlane.f32.xlu0 %v1144
        %v1146 = vpop.xlane.xlu0 %1145
        %v1147 = vrcp.pop %v1146
        %v1148 = vmul.f32 %v1143, %v1147
        %v1149 = vpack.c.bf16 %v1148, %v1148
        %1151 = vrot.lane.b32.xlu0 %v979, 120
        %v1152 = vpop.permute.xlu0 %1151
        %v1154 = vsel %vm980, %v1149, 0
        %v1157 = vsel %vm1042, %v1152, 0
        %1159 = vmatprep.subr.bf16.mxu0 0
        %1160 = vmatpush1.bf16.msra.mxu0 %v1157
        %1161 = vmatprep.subr.bf16.mxu0 0
        %1162 = vmatpush1.bf16.msra.mxu0 0
        %1163 = vmatprep.subr.bf16.mxu0 0
        %1164 = vmatpush1.bf16.msra.mxu0 0
        %1165 = vmatprep.subr.bf16.mxu0 0
        %1166 = vmatpush1.bf16.msra.mxu0 0
        %1167 = vmatprep.subr.bf16.mxu0 0
        %1168 = vmatpush1.bf16.msra.mxu0 0
        %1169 = vmatprep.subr.bf16.mxu0 0
        %1170 = vmatpush1.bf16.msra.mxu0 0
        %1171 = vmatprep.subr.bf16.mxu0 0
        %1172 = vmatpush1.bf16.msra.mxu0 0
        %1173 = vmatprep.subr.bf16.mxu0 0
        %1174 = vmatpush1.bf16.msra.mxu0 0
        %1175 = vmatprep.subr.bf16.mxu0 0
        %1176 = vmatpush1.bf16.msra.mxu0 0
        %1177 = vmatprep.subr.bf16.mxu0 0
        %1178 = vmatpush1.bf16.msra.mxu0 0
        %1179 = vmatprep.subr.bf16.mxu0 0
        %1180 = vmatpush1.bf16.msra.mxu0 0
        %1181 = vmatprep.subr.bf16.mxu0 0
        %1182 = vmatpush1.bf16.msra.mxu0 0
        %1183 = vmatprep.subr.bf16.mxu0 0
        %1184 = vmatpush1.bf16.msra.mxu0 0
        %1185 = vmatprep.subr.bf16.mxu0 0
        %1186 = vmatpush1.bf16.msra.mxu0 0
        %1187 = vmatprep.subr.bf16.mxu0 0
        %1188 = vmatpush1.bf16.msra.mxu0 0
        %1189 = vmatprep.subr.bf16.mxu0 0
        %1190 = vmatpush1.bf16.msra.mxu0 0
        %1191 = vmatprep.mubr.bf16.mxu0 0
        %1192 = vmatmul.mubr.bf16.gmra.mrb[0].mxu0 %v1154
        %v1193 = vpop.f32.mrb[0].mxu0
        %v1194 = vadd.f32 0.0, %v1193
        %v1195 = vpop.f32.mrb[0].mxu0
        %v1196 = vpop.f32.mrb[0].mxu0
        %v1197 = vpop.f32.mrb[0].mxu0
        %1198 = vdwg.mxu0
        %1199 = vrot.lane.b32.xlu0 %v977, 112
        %v1200 = vpop.permute.xlu0 %1199
        %1201 = vrot.lane.b32.xlu0 %v978, 112
        %v1202 = vpop.permute.xlu0 %1201
        %v1204 = vsel %vm980, %v1200, 0
        %v1207 = vsel %vm980, %v1202, 0
        %1209 = vmatprep.subr.bf16.mxu0 0
        %1210 = vmatpush1.bf16.xpose.msra.mxu0 %v1207
        %1211 = vmatprep.subr.bf16.mxu0 0
        %1212 = vmatpush1.bf16.xpose.msra.mxu0 0
        %1213 = vmatprep.subr.bf16.mxu0 0
        %1214 = vmatpush1.bf16.xpose.msra.mxu0 0
        %1215 = vmatprep.subr.bf16.mxu0 0
        %1216 = vmatpush1.bf16.xpose.msra.mxu0 0
        %1217 = vmatprep.subr.bf16.mxu0 0
        %1218 = vmatpush1.bf16.xpose.msra.mxu0 0
        %1219 = vmatprep.subr.bf16.mxu0 0
        %1220 = vmatpush1.bf16.xpose.msra.mxu0 0
        %1221 = vmatprep.subr.bf16.mxu0 0
        %1222 = vmatpush1.bf16.xpose.msra.mxu0 0
        %1223 = vmatprep.subr.bf16.mxu0 0
        %1224 = vmatpush1.bf16.xpose.msra.mxu0 0
        %1225 = vmatprep.subr.bf16.mxu0 0
        %1226 = vmatpush1.bf16.xpose.msra.mxu0 0
        %1227 = vmatprep.subr.bf16.mxu0 0
        %1228 = vmatpush1.bf16.xpose.msra.mxu0 0
        %1229 = vmatprep.subr.bf16.mxu0 0
        %1230 = vmatpush1.bf16.xpose.msra.mxu0 0
        %1231 = vmatprep.subr.bf16.mxu0 0
        %1232 = vmatpush1.bf16.xpose.msra.mxu0 0
        %1233 = vmatprep.subr.bf16.mxu0 0
        %1234 = vmatpush1.bf16.xpose.msra.mxu0 0
        %1235 = vmatprep.subr.bf16.mxu0 0
        %1236 = vmatpush1.bf16.xpose.msra.mxu0 0
        %1237 = vmatprep.subr.bf16.mxu0 0
        %1238 = vmatpush1.bf16.xpose.msra.mxu0 0
        %1239 = vmatprep.subr.bf16.mxu0 0
        %1240 = vmatpush1.bf16.xpose.msra.mxu0 0
        %1241 = vmatprep.mubr.bf16.mxu0 0
        %1242 = vmatmul.mubr.bf16.gmra.mrb[0].mxu0 %v1204
        %v1243 = vpop.f32.mrb[0].mxu0
        %v1244 = vadd.f32 0.0, %v1243
        %v1245 = vpop.f32.mrb[0].mxu0
        %v1246 = vpop.f32.mrb[0].mxu0
        %v1247 = vpop.f32.mrb[0].mxu0
        %1248 = vdwg.mxu0
        %v1249 = vsel %vm980, %v1244, -inf
        %1250 = vmax.xlane.f32.xlu0 %v1249
        %v1251 = vpop.xlane.xlu0 %1250
        %v1252 = vsub.f32 %v1244, %v1251
        %v1253 = vmul.f32 %v1252, 1.442695
        %v1254 = vpow.pop %v1253
        %v1255 = vsel %vm980, %v1254, 0.0
        %1256 = vadd.xlane.f32.xlu0 %v1255
        %v1257 = vpop.xlane.xlu0 %1256
        %v1258 = vrcp.pop %v1257
        %v1259 = vmul.f32 %v1254, %v1258
        %v1260 = vpack.c.bf16 %v1259, %v1259
        %1261 = vrot.lane.b32.xlu0 %v979, 112
        %v1262 = vpop.permute.xlu0 %1261
        %v1264 = vsel %vm980, %v1260, 0
        %v1267 = vsel %vm1042, %v1262, 0
        %1269 = vmatprep.subr.bf16.mxu0 0
        %1270 = vmatpush1.bf16.msra.mxu0 %v1267
        %1271 = vmatprep.subr.bf16.mxu0 0
        %1272 = vmatpush1.bf16.msra.mxu0 0
        %1273 = vmatprep.subr.bf16.mxu0 0
        %1274 = vmatpush1.bf16.msra.mxu0 0
        %1275 = vmatprep.subr.bf16.mxu0 0
        %1276 = vmatpush1.bf16.msra.mxu0 0
        %1277 = vmatprep.subr.bf16.mxu0 0
        %1278 = vmatpush1.bf16.msra.mxu0 0
        %1279 = vmatprep.subr.bf16.mxu0 0
        %1280 = vmatpush1.bf16.msra.mxu0 0
        %1281 = vmatprep.subr.bf16.mxu0 0
        %1282 = vmatpush1.bf16.msra.mxu0 0
        %1283 = vmatprep.subr.bf16.mxu0 0
        %1284 = vmatpush1.bf16.msra.mxu0 0
        %1285 = vmatprep.subr.bf16.mxu0 0
        %1286 = vmatpush1.bf16.msra.mxu0 0
        %1287 = vmatprep.subr.bf16.mxu0 0
        %1288 = vmatpush1.bf16.msra.mxu0 0
        %1289 = vmatprep.subr.bf16.mxu0 0
        %1290 = vmatpush1.bf16.msra.mxu0 0
        %1291 = vmatprep.subr.bf16.mxu0 0
        %1292 = vmatpush1.bf16.msra.mxu0 0
        %1293 = vmatprep.subr.bf16.mxu0 0
        %1294 = vmatpush1.bf16.msra.mxu0 0
        %1295 = vmatprep.subr.bf16.mxu0 0
        %1296 = vmatpush1.bf16.msra.mxu0 0
        %1297 = vmatprep.subr.bf16.mxu0 0
        %1298 = vmatpush1.bf16.msra.mxu0 0
        %1299 = vmatprep.subr.bf16.mxu0 0
        %1300 = vmatpush1.bf16.msra.mxu0 0
        %1301 = vmatprep.mubr.bf16.mxu0 0
        %1302 = vmatmul.mubr.bf16.gmra.mrb[0].mxu0 %v1264
        %v1303 = vpop.f32.mrb[0].mxu0
        %v1304 = vadd.f32 0.0, %v1303
        %v1305 = vpop.f32.mrb[0].mxu0
        %v1306 = vpop.f32.mrb[0].mxu0
        %v1307 = vpop.f32.mrb[0].mxu0
        %1308 = vdwg.mxu0
        %1309 = vrot.lane.b32.xlu0 %v977, 104
        %v1310 = vpop.permute.xlu0 %1309
        %1311 = vrot.lane.b32.xlu0 %v978, 104
        %v1312 = vpop.permute.xlu0 %1311
        %v1314 = vsel %vm980, %v1310, 0
        %v1317 = vsel %vm980, %v1312, 0
        %1319 = vmatprep.subr.bf16.mxu0 0
        %1320 = vmatpush1.bf16.xpose.msra.mxu0 %v1317
        %1321 = vmatprep.subr.bf16.mxu0 0
        %1322 = vmatpush1.bf16.xpose.msra.mxu0 0
        %1323 = vmatprep.subr.bf16.mxu0 0
        %1324 = vmatpush1.bf16.xpose.msra.mxu0 0
        %1325 = vmatprep.subr.bf16.mxu0 0
        %1326 = vmatpush1.bf16.xpose.msra.mxu0 0
        %1327 = vmatprep.subr.bf16.mxu0 0
        %1328 = vmatpush1.bf16.xpose.msra.mxu0 0
        %1329 = vmatprep.subr.bf16.mxu0 0
        %1330 = vmatpush1.bf16.xpose.msra.mxu0 0
        %1331 = vmatprep.subr.bf16.mxu0 0
        %1332 = vmatpush1.bf16.xpose.msra.mxu0 0
        %1333 = vmatprep.subr.bf16.mxu0 0
        %1334 = vmatpush1.bf16.xpose.msra.mxu0 0
        %1335 = vmatprep.subr.bf16.mxu0 0
        %1336 = vmatpush1.bf16.xpose.msra.mxu0 0
        %1337 = vmatprep.subr.bf16.mxu0 0
        %1338 = vmatpush1.bf16.xpose.msra.mxu0 0
        %1339 = vmatprep.subr.bf16.mxu0 0
        %1340 = vmatpush1.bf16.xpose.msra.mxu0 0
        %1341 = vmatprep.subr.bf16.mxu0 0
        %1342 = vmatpush1.bf16.xpose.msra.mxu0 0
        %1343 = vmatprep.subr.bf16.mxu0 0
        %1344 = vmatpush1.bf16.xpose.msra.mxu0 0
        %1345 = vmatprep.subr.bf16.mxu0 0
        %1346 = vmatpush1.bf16.xpose.msra.mxu0 0
        %1347 = vmatprep.subr.bf16.mxu0 0
        %1348 = vmatpush1.bf16.xpose.msra.mxu0 0
        %1349 = vmatprep.subr.bf16.mxu0 0
        %1350 = vmatpush1.bf16.xpose.msra.mxu0 0
        %1351 = vmatprep.mubr.bf16.mxu0 0
        %1352 = vmatmul.mubr.bf16.gmra.mrb[0].mxu0 %v1314
        %v1353 = vpop.f32.mrb[0].mxu0
        %v1354 = vadd.f32 0.0, %v1353
        %v1355 = vpop.f32.mrb[0].mxu0
        %v1356 = vpop.f32.mrb[0].mxu0
        %v1357 = vpop.f32.mrb[0].mxu0
        %1358 = vdwg.mxu0
        %v1359 = vsel %vm980, %v1354, -inf
        %1360 = vmax.xlane.f32.xlu0 %v1359
        %v1361 = vpop.xlane.xlu0 %1360
        %v1362 = vsub.f32 %v1354, %v1361
        %v1363 = vmul.f32 %v1362, 1.442695
        %v1364 = vpow.pop %v1363
        %v1365 = vsel %vm980, %v1364, 0.0
        %1366 = vadd.xlane.f32.xlu0 %v1365
        %v1367 = vpop.xlane.xlu0 %1366
        %v1368 = vrcp.pop %v1367
        %v1369 = vmul.f32 %v1364, %v1368
        %v1370 = vpack.c.bf16 %v1369, %v1369
        %1371 = vrot.lane.b32.xlu0 %v979, 104
        %v1372 = vpop.permute.xlu0 %1371
        %v1374 = vsel %vm980, %v1370, 0
        %v1377 = vsel %vm1042, %v1372, 0
        %1379 = vmatprep.subr.bf16.mxu0 0
        %1380 = vmatpush1.bf16.msra.mxu0 %v1377
        %1381 = vmatprep.subr.bf16.mxu0 0
        %1382 = vmatpush1.bf16.msra.mxu0 0
        %1383 = vmatprep.subr.bf16.mxu0 0
        %1384 = vmatpush1.bf16.msra.mxu0 0
        %1385 = vmatprep.subr.bf16.mxu0 0
        %1386 = vmatpush1.bf16.msra.mxu0 0
        %1387 = vmatprep.subr.bf16.mxu0 0
        %1388 = vmatpush1.bf16.msra.mxu0 0
        %1389 = vmatprep.subr.bf16.mxu0 0
        %1390 = vmatpush1.bf16.msra.mxu0 0
        %1391 = vmatprep.subr.bf16.mxu0 0
        %1392 = vmatpush1.bf16.msra.mxu0 0
        %1393 = vmatprep.subr.bf16.mxu0 0
        %1394 = vmatpush1.bf16.msra.mxu0 0
        %1395 = vmatprep.subr.bf16.mxu0 0
        %1396 = vmatpush1.bf16.msra.mxu0 0
        %1397 = vmatprep.subr.bf16.mxu0 0
        %1398 = vmatpush1.bf16.msra.mxu0 0
        %1399 = vmatprep.subr.bf16.mxu0 0
        %1400 = vmatpush1.bf16.msra.mxu0 0
        %1401 = vmatprep.subr.bf16.mxu0 0
        %1402 = vmatpush1.bf16.msra.mxu0 0
        %1403 = vmatprep.subr.bf16.mxu0 0
        %1404 = vmatpush1.bf16.msra.mxu0 0
        %1405 = vmatprep.subr.bf16.mxu0 0
        %1406 = vmatpush1.bf16.msra.mxu0 0
        %1407 = vmatprep.subr.bf16.mxu0 0
        %1408 = vmatpush1.bf16.msra.mxu0 0
        %1409 = vmatprep.subr.bf16.mxu0 0
        %1410 = vmatpush1.bf16.msra.mxu0 0
        %1411 = vmatprep.mubr.bf16.mxu0 0
        %1412 = vmatmul.mubr.bf16.gmra.mrb[0].mxu0 %v1374
        %v1413 = vpop.f32.mrb[0].mxu0
        %v1414 = vadd.f32 0.0, %v1413
        %v1415 = vpop.f32.mrb[0].mxu0
        %v1416 = vpop.f32.mrb[0].mxu0
        %v1417 = vpop.f32.mrb[0].mxu0
        %1418 = vdwg.mxu0
        %1420 = vrot.lane.b32.xlu0 %v1194, 8
        %v1421 = vpop.permute.xlu0 %1420
        %1424 = vrot.lane.b32.xlu0 %v1304, 16
        %v1425 = vpop.permute.xlu0 %1424
        %1428 = vrot.lane.b32.xlu0 %v1414, 24
        %v1429 = vpop.permute.xlu0 %1428
        %v1431 = vsel %vm980, %v1081, %v1421
        %vm1432 = vcmask 130048
        %v1433 = vsel %vm1432, %v1431, %v1425
        %vm1434 = vcmask 195584
        %v1435 = vsel %vm1434, %v1433, %v1429
        %v1436 = vpack.c.bf16 %v1435, %v1435
        %v1437 = vld [vmem:[%s10] sm:$0xf]
        %v1438 = vld [vmem:[%s10 + $0x4] sm:$0xf]
        %v1439 = vld [vmem:[%s10 + $0x8] sm:$0xf]
        %v1440 = vld [vmem:[%s10 + $0xc] sm:$0xf]
        %v1441 = vld [vmem:[#allocation13] sm:$0x1]
        %v1443 = vlaneseq
        %v1444 = vshrl.u32 %v1443, 7
        %v1445 = vsub.s32 0, %v1444
        %v1446 = vrot.slane %v1441, %v1445
        %v1452 = vunpack.c.l.b16 %v1437
        %v1453 = vunpack.c.l.b16 %v1438
        %v1454 = vunpack.c.l.b16 %v1439
        %v1455 = vunpack.c.l.b16 %v1440
        %v1456 = vpack.c.b16 %v1453, %v1452
        %v1457 = vpack.c.b16 %v1455, %v1454
        %v1461 = vsel %vm735, %v1436, 0
        %1463 = vmatprep.subr.bf16.mxu0 0
        %1464 = vmatpush1.bf16.msra.mxu0 %v1456
        %1465 = vmatprep.subr.bf16.mxu0 0
        %1466 = vmatpush1.bf16.msra.mxu0 %v1457
        %1467 = vmatprep.subr.bf16.mxu0 0
        %1468 = vmatpush1.bf16.msra.mxu0 0
        %1469 = vmatprep.subr.bf16.mxu0 0
        %1470 = vmatpush1.bf16.msra.mxu0 0
        %1471 = vmatprep.subr.bf16.mxu0 0
        %1472 = vmatpush1.bf16.msra.mxu0 0
        %1473 = vmatprep.subr.bf16.mxu0 0
        %1474 = vmatpush1.bf16.msra.mxu0 0
        %1475 = vmatprep.subr.bf16.mxu0 0
        %1476 = vmatpush1.bf16.msra.mxu0 0
        %1477 = vmatprep.subr.bf16.mxu0 0
        %1478 = vmatpush1.bf16.msra.mxu0 0
        %1479 = vmatprep.subr.bf16.mxu0 0
        %1480 = vmatpush1.bf16.msra.mxu0 0
        %1481 = vmatprep.subr.bf16.mxu0 0
        %1482 = vmatpush1.bf16.msra.mxu0 0
        %1483 = vmatprep.subr.bf16.mxu0 0
        %1484 = vmatpush1.bf16.msra.mxu0 0
        %1485 = vmatprep.subr.bf16.mxu0 0
        %1486 = vmatpush1.bf16.msra.mxu0 0
        %1487 = vmatprep.subr.bf16.mxu0 0
        %1488 = vmatpush1.bf16.msra.mxu0 0
        %1489 = vmatprep.subr.bf16.mxu0 0
        %1490 = vmatpush1.bf16.msra.mxu0 0
        %1491 = vmatprep.subr.bf16.mxu0 0
        %1492 = vmatpush1.bf16.msra.mxu0 0
        %1493 = vmatprep.subr.bf16.mxu0 0
        %1494 = vmatpush1.bf16.msra.mxu0 0
        %1495 = vmatprep.mubr.bf16.mxu0 0
        %1496 = vmatmul.mubr.bf16.gmra.mrb[0].mxu0 %v1461
        %v1497 = vpop.f32.mrb[0].mxu0
        %v1498 = vadd.f32 %v1446, %v1497
        %v1499 = vpop.f32.mrb[0].mxu0
        %v1500 = vpop.f32.mrb[0].mxu0
        %v1501 = vpop.f32.mrb[0].mxu0
        %1502 = vdwg.mxu0
        %v1503 = vadd.f32 %v731, %v1498
        %v1504 = vld [vmem:[#allocation14] sm:$0x1]
        %v1505 = vld [vmem:[#allocation16] sm:$0x1]
        %v1506 = vsel %vm735, %v1503, 0.0
        %1507 = vadd.xlane.f32.xlu0 %v1506
        %v1508 = vpop.xlane.xlu0 %1507
        %v1509 = vmul.f32 %v1508, %v739
        %v1510 = vsub.f32 %v1503, %v1509
        %v1511 = vmul.f32 %v1510, %v1510
        %v1512 = vsel %vm735, %v1511, 0.0
        %1513 = vadd.xlane.f32.xlu0 %v1512
        %v1514 = vpop.xlane.xlu0 %1513
        %v1515 = vmul.f32 %v1514, %v739
        %v1516 = vadd.f32 %v1515, 1e-05
        %v1517 = vrsqrt.pop %v1516
        %v1518 = vmul.f32 %v1510, %v1517
        %v1520 = vlaneseq
        %v1521 = vshrl.u32 %v1520, 7
        %v1522 = vsub.s32 0, %v1521
        %v1523 = vrot.slane %v1504, %v1522
        %v1525 = vmul.f32 %v1518, %v1523
        %v1527 = vlaneseq
        %v1528 = vshrl.u32 %v1527, 7
        %v1529 = vsub.s32 0, %v1528
        %v1530 = vrot.slane %v1505, %v1529
        %v1532 = vadd.f32 %v1525, %v1530
        %v1533 = vpack.c.bf16 %v1532, %v1532
        %v1534 = vld [vmem:[%s14] sm:$0xf]
        %v1535 = vld [vmem:[%s14 + $0x4] sm:$0xf]
        %v1536 = vld [vmem:[%s14 + $0x8] sm:$0xf]
        %v1537 = vld [vmem:[%s14 + $0xc] sm:$0xf]
        %v1538 = vld [vmem:[%s15] sm:$0x1]
        %v1540 = vlaneseq
        %v1541 = vshrl.u32 %v1540, 7
        %v1542 = vsub.s32 0, %v1541
        %v1543 = vrot.slane %v1538, %v1542
        %v1549 = vunpack.c.l.b16 %v1534
        %v1550 = vunpack.c.l.b16 %v1535
        %v1551 = vunpack.c.l.b16 %v1536
        %v1552 = vunpack.c.l.b16 %v1537
        %v1553 = vpack.c.b16 %v1550, %v1549
        %v1554 = vpack.c.b16 %v1552, %v1551
        %v1558 = vsel %vm735, %v1533, 0
        %1560 = vmatprep.subr.bf16.mxu0 0
        %1561 = vmatpush1.bf16.msra.mxu0 %v1553
        %1562 = vmatprep.subr.bf16.mxu0 0
        %1563 = vmatpush1.bf16.msra.mxu0 %v1554
        %1564 = vmatprep.subr.bf16.mxu0 0
        %1565 = vmatpush1.bf16.msra.mxu0 0
        %1566 = vmatprep.subr.bf16.mxu0 0
        %1567 = vmatpush1.bf16.msra.mxu0 0
        %1568 = vmatprep.subr.bf16.mxu0 0
        %1569 = vmatpush1.bf16.msra.mxu0 0
        %1570 = vmatprep.subr.bf16.mxu0 0
        %1571 = vmatpush1.bf16.msra.mxu0 0
        %1572 = vmatprep.subr.bf16.mxu0 0
        %1573 = vmatpush1.bf16.msra.mxu0 0
        %1574 = vmatprep.subr.bf16.mxu0 0
        %1575 = vmatpush1.bf16.msra.mxu0 0
        %1576 = vmatprep.subr.bf16.mxu0 0
        %1577 = vmatpush1.bf16.msra.mxu0 0
        %1578 = vmatprep.subr.bf16.mxu0 0
        %1579 = vmatpush1.bf16.msra.mxu0 0
        %1580 = vmatprep.subr.bf16.mxu0 0
        %1581 = vmatpush1.bf16.msra.mxu0 0
        %1582 = vmatprep.subr.bf16.mxu0 0
        %1583 = vmatpush1.bf16.msra.mxu0 0
        %1584 = vmatprep.subr.bf16.mxu0 0
        %1585 = vmatpush1.bf16.msra.mxu0 0
        %1586 = vmatprep.subr.bf16.mxu0 0
        %1587 = vmatpush1.bf16.msra.mxu0 0
        %1588 = vmatprep.subr.bf16.mxu0 0
        %1589 = vmatpush1.bf16.msra.mxu0 0
        %1590 = vmatprep.subr.bf16.mxu0 0
        %1591 = vmatpush1.bf16.msra.mxu0 0
        %1592 = vmatprep.mubr.bf16.mxu0 0
        %1593 = vmatmul.mubr.bf16.gmra.mrb[0].mxu0 %v1558
        %v1594 = vpop.f32.mrb[0].mxu0
        %v1595 = vadd.f32 %v1543, %v1594
        %v1596 = vpop.f32.mrb[0].mxu0
        %v1597 = vpop.f32.mrb[0].mxu0
        %v1598 = vpop.f32.mrb[0].mxu0
        %1599 = vdwg.mxu0
        %v1600 = vmul.f32 %v1595, 0.5
        %v1601 = vmul.f32 %v1595, 0.70710677
        %v1602 = verf.f32.pop %v1601
        %v1603 = vadd.f32 %v1602, 1.0
        %v1604 = vmul.f32 %v1600, %v1603
        %v1605 = vpack.c.bf16 %v1604, %v1604
        %v1606 = vld [vmem:[%s16] sm:$0xf]
        %v1607 = vld [vmem:[%s16 + $0x4] sm:$0xf]
        %v1608 = vld [vmem:[%s16 + $0x8] sm:$0xf]
        %v1609 = vld [vmem:[%s16 + $0xc] sm:$0xf]
        %v1610 = vld [vmem:[%s16 + $0x10] sm:$0xf]
        %v1611 = vld [vmem:[%s16 + $0x14] sm:$0xf]
        %v1612 = vld [vmem:[%s16 + $0x18] sm:$0xf]
        %v1613 = vld [vmem:[%s16 + $0x1c] sm:$0xf]
        %v1622 = vunpack.c.l.b16 %v1606
        %v1623 = vunpack.c.l.b16 %v1607
        %v1624 = vunpack.c.l.b16 %v1608
        %v1625 = vunpack.c.l.b16 %v1609
        %v1626 = vunpack.c.l.b16 %v1610
        %v1627 = vunpack.c.l.b16 %v1611
        %v1628 = vunpack.c.l.b16 %v1612
        %v1629 = vunpack.c.l.b16 %v1613
        %v1630 = vpack.c.b16 %v1623, %v1622
        %v1631 = vpack.c.b16 %v1625, %v1624
        %v1632 = vpack.c.b16 %v1627, %v1626
        %v1633 = vpack.c.b16 %v1629, %v1628
        %vm1638 = vcmask 523264
        %v1640 = vsel %vm1638, %v1605, 0
        %1642 = vmatprep.subr.bf16.mxu0 0
        %1643 = vmatpush1.bf16.msra.mxu0 %v1630
        %1644 = vmatprep.subr.bf16.mxu0 0
        %1645 = vmatpush1.bf16.msra.mxu0 %v1631
        %1646 = vmatprep.subr.bf16.mxu0 0
        %1647 = vmatpush1.bf16.msra.mxu0 %v1632
        %1648 = vmatprep.subr.bf16.mxu0 0
        %1649 = vmatpush1.bf16.msra.mxu0 %v1633
        %1650 = vmatprep.subr.bf16.mxu0 0
        %1651 = vmatpush1.bf16.msra.mxu0 0
        %1652 = vmatprep.subr.bf16.mxu0 0
        %1653 = vmatpush1.bf16.msra.mxu0 0
        %1654 = vmatprep.subr.bf16.mxu0 0
        %1655 = vmatpush1.bf16.msra.mxu0 0
        %1656 = vmatprep.subr.bf16.mxu0 0
        %1657 = vmatpush1.bf16.msra.mxu0 0
        %1658 = vmatprep.subr.bf16.mxu0 0
        %1659 = vmatpush1.bf16.msra.mxu0 0
        %1660 = vmatprep.subr.bf16.mxu0 0
        %1661 = vmatpush1.bf16.msra.mxu0 0
        %1662 = vmatprep.subr.bf16.mxu0 0
        %1663 = vmatpush1.bf16.msra.mxu0 0
        %1664 = vmatprep.subr.bf16.mxu0 0
        %1665 = vmatpush1.bf16.msra.mxu0 0
        %1666 = vmatprep.subr.bf16.mxu0 0
        %1667 = vmatpush1.bf16.msra.mxu0 0
        %1668 = vmatprep.subr.bf16.mxu0 0
        %1669 = vmatpush1.bf16.msra.mxu0 0
        %1670 = vmatprep.subr.bf16.mxu0 0
        %1671 = vmatpush1.bf16.msra.mxu0 0
        %1672 = vmatprep.subr.bf16.mxu0 0
        %1673 = vmatpush1.bf16.msra.mxu0 0
        %1674 = vmatprep.mubr.bf16.mxu0 0
        %1675 = vmatmul.mubr.bf16.gmra.mrb[0].mxu0 %v1640
        %v1676 = vpop.f32.mrb[0].mxu0
        %v1677 = vadd.f32 0.0, %v1676
        %v1678 = vpop.f32.mrb[0].mxu0
        %v1679 = vpop.f32.mrb[0].mxu0
        %v1680 = vpop.f32.mrb[0].mxu0
        %1681 = vdwg.mxu0
        %v1682 = vadd.f32 %v1503, %v1677
        %v1683 = vld [vmem:[%s17] sm:$0x1]
        %v1685 = vlaneseq
        %v1686 = vshrl.u32 %v1685, 7
        %v1687 = vsub.s32 0, %v1686
        %v1688 = vrot.slane %v1683, %v1687
        %v1690 = vadd.f32 %v1682, %v1688
        %1691 = vst.msk [vmem:[%s718] sm:$0xff] %vm735, %v1690
        %s1692 = sand.u32 %s449, 1
        %s1693 = scalar_lea.sflag [#allocation4], %s1692
        %s1694 = sand.u32 %s449, 1
        %s1695 = smul.addr %s1694, 8
        %s1696 = scalar_lea.vmem [#allocation17], %s1695
        // Predicated region
        $region129: #{tpu_custom_call.1} parent=91 // pred_check
          %p1697 = pneg %p459
        $region130: #{tpu_custom_call.1} parent=91 // pred_check_branch
          %1699 = sbr.rel (%p1697) target = $region132
        $region131: #{tpu_custom_call.1} parent=91 // pred_region
          %s1701 = ssub.s32 128, 128
          %1702 = vsyncadd %s1693, %s1701
          %s1703 = sadd.s32 %s42, %s41
          %s1704 = smul.addr %s1703, 128
          %s1705 = scalar_lea.hbm %s18, %s1704
          %s1707 = sshll.u32 %s1696, 4
          %s1708 = int_to_ptr.vmem [resolvable:$true] %s1707
          %1710 = dma.vmem_to_hbm [thread:$0]  %s1708, 128, %s1705, %s1693
        $region132: #{tpu_custom_call.1} parent=91 // pred_fallthru
          _
      $region92: #{tpu_custom_call.1} parent=5 // pred_fallthru
        _
      %p1711 = scmp.le.s32.totalorder 2, %s32
      // Predicated region
      $region133: #{tpu_custom_call.1} parent=5 // pred_check
        %p1712 = pneg %p1711
      $region134: #{tpu_custom_call.1} parent=5 // pred_check_branch
        %1714 = sbr.rel (%p1712) target = $region136
      $region135: #{tpu_custom_call.1} parent=5 // pred_region
        %s1715 = ssub.s32 %s32, 2
        // Predicated region
        $region137: #{tpu_custom_call.1} parent=135 // pred_check
          %p1716 = pneg %p465
        $region138: #{tpu_custom_call.1} parent=135 // pred_check_branch
          %1718 = sbr.rel (%p1716) target = $region140
        $region139: #{tpu_custom_call.1} parent=135 // pred_region
          %s1719 = sand.u32 %s450, 1
          %s1720 = scalar_lea.sflag [#allocation4], %s1719
          %s1721 = sand.u32 %s450, 1
          %s1722 = smul.addr %s1721, 8
          %s1723 = scalar_lea.vmem [#allocation17], %s1722
          %1724 = dma.done %s1720, 128
        $region140: #{tpu_custom_call.1} parent=135 // pred_fallthru
          _
      $region136: #{tpu_custom_call.1} parent=5 // pred_fallthru
        _
    $region6: #{tpu_custom_call.1} parent=1 // loop_footer
      %s36 = sadd.s32 1, %s32
    $region7: #{tpu_custom_call.1} parent=1 // loop_footer_branch
      %31 = sbr.rel target = $region3
    $region8: #{tpu_custom_call.1} parent=1 // loop_exit
      _
    %1725 = vsyncpa [#allocation3], 1
    %s1726 = scalar_lea.sflag [#allocation3], 1
    %1727 = vsyncpa %s1726, 1
    %1728 = vsyncpa [#allocation6], 1
    %1729 = vsyncpa [#allocation9], 1
    %1730 = vsyncpa [#allocation12], 1
    %1731 = vsyncpa [#allocation15], 1
    %1732 = vsyncpa [#allocation4], 1
    %s1733 = scalar_lea.sflag [#allocation4], 1
    %1734 = vsyncpa %s1733, 1

</llo_original>
